<compile_context>
chip_gen: v7x
topology: tpu7x:2x2x1
jax: 0.10.0
libtpu: 0.0.40
codegen_flags: <defaults>
</compile_context>

<pallas_src>
import functools

import jax
import jax.numpy as jnp
import numpy as np
from jax.experimental import pallas as pl
from jax.experimental.pallas import tpu as pltpu

EOS_COEF = 0.1
TEMPERATURE = 0.07


def _round_up(a, b):
    return ((a + b - 1) // b) * b


# ---------------------------------------------------------------------------
# Kernel 1: loss_labels_st dense term
#   per query: (log(t + 1e-6)*t - log_softmax(x)*t).sum(-1) * eos_weight
# ---------------------------------------------------------------------------
def _labels_st_kernel(x_ref, t_ref, w_ref, o_ref):
    x = x_ref[...].astype(jnp.float32)            # [tm, C] raw logits
    t = t_ref[...].astype(jnp.float32)            # [tm, C] target_sim
    w = w_ref[...].astype(jnp.float32)            # [tm, 1] eos weighting

    # log_softmax along the class/token axis (full width inside the tile).
    m = jnp.max(x, axis=-1, keepdims=True)
    e = jnp.exp(x - m)
    logp = (x - m) - jnp.log(jnp.sum(e, axis=-1, keepdims=True))

    entropy = jnp.log(t + 1e-6) * t
    per_row = jnp.sum(entropy - logp * t, axis=-1, keepdims=True)   # [tm, 1]
    o_ref[...] = (per_row * w).astype(o_ref.dtype)


def loss_labels_st(pred_logits, target_sim, eos_weight, num_boxes, *, max_rows=512):
    """pred_logits/target_sim: [B, Q, C], eos_weight: [B, Q] -> scalar loss_ce."""
    B, Q, C = pred_logits.shape
    assert target_sim.shape == (B, Q, C) and eos_weight.shape == (B, Q)
    R = B * Q
    C_pad = _round_up(C, 128)
    R_rows = _round_up(R, 8)

    # Big tiles (few ~0.35us grid steps), but keep each (tm, C_pad) f32 input
    # block <= ~4 MiB so 2 inputs x 2 pipeline buffers fit every generation.
    tm_cap = max(8, (((4 << 20) // (C_pad * 4)) // 8) * 8)
    tm = min(max_rows, tm_cap, R_rows)
    # Prefer >= 2 grid steps so ("parallel",) can use both v7x TensorCores.
    if R_rows // tm < 2 and R_rows >= 16:
        tm = _round_up(max(R_rows // 2, 8), 8)
    R_pad = _round_up(R_rows, tm)
    grid = R_pad // tm

    x = pred_logits.astype(jnp.float32).reshape(R, C)
    t = target_sim.reshape(R, C)                    # may be bf16 (exact 0/0.5/1)
    w = eos_weight.astype(jnp.float32).reshape(R, 1)

    # Padded logits are -1e9 (vanish under softmax), padded targets/weights 0,
    # so padded rows/classes contribute exactly zero.
    x = jnp.pad(x, ((0, R_pad - R), (0, C_pad - C)), constant_values=-1e9)
    t = jnp.pad(t, ((0, R_pad - R), (0, C_pad - C)))
    w = jnp.pad(w, ((0, R_pad - R), (0, 0)))

    row_spec = pl.BlockSpec((tm, C_pad), lambda i: (i, 0))
    col_spec = pl.BlockSpec((tm, 1), lambda i: (i, 0))
    per_query = pl.pallas_call(
        _labels_st_kernel,
        out_shape=jax.ShapeDtypeStruct((R_pad, 1), jnp.float32),
        grid_spec=pl.GridSpec(
            grid=(grid,),
            in_specs=[row_spec, row_spec, col_spec],
            out_specs=col_spec,
        ),
        compiler_params=pltpu.CompilerParams(dimension_semantics=("parallel",)),
    )(x, t, w)
    return jnp.sum(per_query) / num_boxes


# ---------------------------------------------------------------------------
# Kernel 2: loss_contrastive_align dense term (one batch element per step)
# ---------------------------------------------------------------------------
def _contrastive_align_kernel(img_ref, txt_ref, pmap_ref, b2t_ref, t2b_ref, *,
                              inv_temp):
    img = img_ref[0]                                # [Q, D] (bf16, MXU-native)
    txt = txt_ref[0]                                # [T, D]
    pmap = pmap_ref[0].astype(jnp.float32)          # [Q, T] in {0, 1}

    logits = jax.lax.dot_general(
        img, txt, dimension_numbers=(((1,), (1,)), ((), ())),
        preferred_element_type=jnp.float32) * inv_temp          # [Q, T] f32
    pos_logits = -logits * pmap          # == -logits.masked_fill(~positive, 0)

    # box -> token : reductions over the token (lane) axis.
    cnt_q = jnp.sum(pmap, axis=-1, keepdims=True)                # [Q, 1]
    nb_q = cnt_q + 1e-6
    m_q = jnp.max(logits, axis=-1, keepdims=True)
    lse_q = m_q + jnp.log(jnp.sum(jnp.exp(logits - m_q), axis=-1, keepdims=True))
    ent_q = -jnp.log(nb_q + 1e-6) / nb_q
    pos_q = jnp.sum(pos_logits, axis=-1, keepdims=True)
    has_q = (cnt_q > 0.0).astype(jnp.float32)
    b2t_ref[0] = (ent_q + pos_q / nb_q + lse_q) * has_q          # [Q, 1]

    # token -> box : reductions over the query (sublane) axis.
    cnt_t = jnp.sum(pmap, axis=0, keepdims=True)                 # [1, T]
    nb_t = cnt_t + 1e-6
    m_t = jnp.max(logits, axis=0, keepdims=True)
    lse_t = m_t + jnp.log(jnp.sum(jnp.exp(logits - m_t), axis=0, keepdims=True))
    ent_t = -jnp.log(nb_t + 1e-6) / nb_t
    pos_t = jnp.sum(pos_logits, axis=0, keepdims=True)
    has_t = (cnt_t > 0.0).astype(jnp.float32)
    t2b_ref[0] = (ent_t + pos_t / nb_t + lse_t) * has_t          # [1, T]


def loss_contrastive_align(proj_queries, proj_tokens, positive_map, mask, tmask,
                           num_boxes, *, temperature=TEMPERATURE):
    """proj_queries: [B,Q,D], proj_tokens: [B,T,D], positive_map: [B,Q,T]."""
    B, Q, D = proj_queries.shape
    _, T, _ = proj_tokens.shape
    assert positive_map.shape == (B, Q, T)
    assert mask.shape == (B, Q) and tmask.shape == (B, T)

    pmap01 = (positive_map > 0).astype(jnp.float32)
    kernel = functools.partial(_contrastive_align_kernel, inv_temp=1.0 / temperature)

    b2t, t2b = pl.pallas_call(
        kernel,
        out_shape=(jax.ShapeDtypeStruct((B, Q, 1), jnp.float32),
                   jax.ShapeDtypeStruct((B, 1, T), jnp.float32)),
        grid_spec=pl.GridSpec(
            grid=(B,),
            in_specs=[pl.BlockSpec((1, Q, D), lambda b: (b, 0, 0)),
                      pl.BlockSpec((1, T, D), lambda b: (b, 0, 0)),
                      pl.BlockSpec((1, Q, T), lambda b: (b, 0, 0))],
            out_specs=(pl.BlockSpec((1, Q, 1), lambda b: (b, 0, 0)),
                       pl.BlockSpec((1, 1, T), lambda b: (b, 0, 0))),
        ),
        compiler_params=pltpu.CompilerParams(dimension_semantics=("parallel",)),
    )(proj_queries, proj_tokens, pmap01)

    box_to_token_loss = jnp.sum(b2t[:, :, 0] * mask)
    token_to_box_loss = jnp.sum(t2b[:, 0, :] * tmask)
    return (box_to_token_loss + token_to_box_loss) * 0.5 / num_boxes


# ---------------------------------------------------------------------------
# Pure-JAX references (mirror the torch module)
# ---------------------------------------------------------------------------
def _ref_loss_labels_st(pred_logits, target_sim, eos_weight, num_boxes):
    logits = jax.nn.log_softmax(pred_logits.astype(jnp.float32), axis=-1)
    t = target_sim.astype(jnp.float32)
    entropy = jnp.log(t + 1e-6) * t
    loss_ce = jnp.sum(entropy - logits * t, axis=-1) * eos_weight.astype(jnp.float32)
    return jnp.sum(loss_ce) / num_boxes


def _ref_loss_contrastive_align(proj_queries, proj_tokens, positive_map, mask,
                                tmask, num_boxes, temperature=TEMPERATURE):
    logits = jnp.einsum("bqd,btd->bqt", proj_queries, proj_tokens,
                        preferred_element_type=jnp.float32) / temperature
    pm = positive_map > 0
    pmf = pm.astype(jnp.float32)
    positive_logits = -logits * pmf
    negative_logits = logits

    boxes_with_pos = jnp.any(pm, axis=2)
    pos_term = positive_logits.sum(axis=2)
    neg_term = jax.nn.logsumexp(negative_logits, axis=2)
    nb_pos = pmf.sum(axis=2) + 1e-6
    entropy = -jnp.log(nb_pos + 1e-6) / nb_pos
    b2t = jnp.where(boxes_with_pos, entropy + pos_term / nb_pos + neg_term, 0.0)
    box_to_token_loss = jnp.sum(b2t * mask)

    tokens_with_pos = jnp.any(pm, axis=1)
    pos_term = positive_logits.sum(axis=1)
    neg_term = jax.nn.logsumexp(negative_logits, axis=1)
    nb_pos = pmf.sum(axis=1) + 1e-6
    entropy = -jnp.log(nb_pos + 1e-6) / nb_pos
    t2b = jnp.where(tokens_with_pos, entropy + pos_term / nb_pos + neg_term, 0.0)
    token_to_box_loss = jnp.sum(t2b * tmask)

    return (box_to_token_loss + token_to_box_loss) / 2.0 / num_boxes


if __name__ == "__main__":
    key = jax.random.PRNGKey(0)
    k_logits, k_img, k_txt = jax.random.split(key, 3)

    # B batches, Q object queries, C = token classes (+ no-object last class),
    # T contrastive text tokens, D projection dim.
    B, Q, C, T, D = 2, 256, 256, 128, 64
    NUM_MATCHED = 8                                   # matched queries / batch

    # ---- host-side pieces the matcher / index-scatter would produce --------
    src_idx = np.arange(NUM_MATCHED) * 13             # matched query ids (< Q)
    seq_lens = np.array([20, 33])                     # tokenized attn lengths

    target_sim = np.zeros((B, Q, C), np.float32)      # default: no-object class
    target_sim[:, :, -1] = 1.0
    eos_weight = np.full((B, Q), EOS_COEF, np.float32)
    positive_map = np.zeros((B, Q, T), np.float32)
    mask = np.full((B, Q), EOS_COEF, np.float32)
    tmask = np.full((B, T), EOS_COEF, np.float32)
    for b in range(B):
        positive_map[b, :, seq_lens[b] - 1] = 0.5
        positive_map[b, :, seq_lens[b] - 2] = 0.5
        tmask[b, seq_lens[b] - 1] = 1.0
        for j, q in enumerate(src_idx):
            target_sim[b, q, :] = 0.0
            target_sim[b, q, 2 * j] = 0.5
            target_sim[b, q, 2 * j + 1] = 0.5
            eos_weight[b, q] = 1.0
            positive_map[b, q, :] = 0.0
            positive_map[b, q, 2 * j] = 1.0
            positive_map[b, q, 2 * j + 1] = 1.0
            mask[b, q] = 1.0

    num_boxes = float(max(B * NUM_MATCHED, 1))        # clamp(min=1); world_size 1
    # TODO(synk): torch.distributed.all_reduce(num_boxes) is a host collective.

    pred_logits = jax.random.normal(k_logits, (B, Q, C), dtype=jnp.float32) * 2.0
    target_sim = jnp.asarray(target_sim).astype(jnp.bfloat16)   # exact 0/0.5/1
    eos_weight = jnp.asarray(eos_weight)

    proj_queries = jax.random.normal(k_img, (B, Q, D), dtype=jnp.float32)
    proj_queries = proj_queries / jnp.linalg.norm(proj_queries, axis=-1, keepdims=True)
    proj_tokens = jax.random.normal(k_txt, (B, T, D), dtype=jnp.float32)
    proj_tokens = proj_tokens / jnp.linalg.norm(proj_tokens, axis=-1, keepdims=True)
    proj_queries = proj_queries.astype(jnp.bfloat16)   # bf16 I/O (same values
    proj_tokens = proj_tokens.astype(jnp.bfloat16)     # feed kernel & reference)
    positive_map = jnp.asarray(positive_map)
    mask = jnp.asarray(mask)
    tmask = jnp.asarray(tmask)

    loss_ce = jax.block_until_ready(
        loss_labels_st(pred_logits, target_sim, eos_weight, num_boxes))
    loss_ctr = jax.block_until_ready(
        loss_contrastive_align(proj_queries, proj_tokens, positive_map,
                               mask, tmask, num_boxes))

    ref_ce = _ref_loss_labels_st(pred_logits, target_sim, eos_weight, num_boxes)
    ref_ctr = _ref_loss_contrastive_align(proj_queries, proj_tokens, positive_map,
                                          mask, tmask, num_boxes)

    assert jnp.allclose(loss_ce, ref_ce, rtol=1e-4, atol=1e-4), (loss_ce, ref_ce)
    assert jnp.allclose(loss_ctr, ref_ctr, rtol=1e-3, atol=1e-3), (loss_ctr, ref_ctr)

    print("KERNEL_OK")
</pallas_src>

<mosaic_0001>
module attributes {stable_mosaic.version = 11 : i64} {
  func.func @_labels_st_kernel(%arg0: i32, %arg1: memref<256x256xf32, #tpu.memory_space<vmem>>, %arg2: memref<256x256xbf16, #tpu.memory_space<vmem>>, %arg3: memref<256x1xf32, #tpu.memory_space<vmem>>, %arg4: memref<256x1xf32, #tpu.memory_space<vmem>>) attributes {dimension_semantics = [#tpu.dimension_semantics<parallel>], iteration_bounds = array<i64: 2>, scalar_prefetch = 0 : i64, scratch_operands = 0 : i64, tpu.core_type = #tpu.core_type<tc>, window_params = [{transform_indices = @transform_0, window_bounds = array<i64: 256, 256>}, {transform_indices = @transform_1, window_bounds = array<i64: 256, 256>}, {transform_indices = @transform_2, window_bounds = array<i64: 256, 1>}, {transform_indices = @transform_3, window_bounds = array<i64: 256, 1>}]} {
    %c0 = arith.constant 0 : index
    %c0_0 = arith.constant 0 : index
    %0 = vector.load %arg1[%c0, %c0_0] : memref<256x256xf32, #tpu.memory_space<vmem>>, vector<256x256xf32>
    %c0_1 = arith.constant 0 : index
    %c0_2 = arith.constant 0 : index
    %1 = vector.load %arg2[%c0_1, %c0_2] : memref<256x256xbf16, #tpu.memory_space<vmem>>, vector<256x256xbf16>
    %2 = arith.extf %1 : vector<256x256xbf16> to vector<256x256xf32>
    %c0_3 = arith.constant 0 : index
    %c0_4 = arith.constant 0 : index
    %3 = vector.load %arg3[%c0_3, %c0_4] : memref<256x1xf32, #tpu.memory_space<vmem>>, vector<256x1xf32>
    %cst = arith.constant dense<0xFF800000> : vector<256xf32>
    %4 = vector.multi_reduction <maximumf>, %0, %cst [1] : vector<256x256xf32> to vector<256xf32>
    %5 = vector.shape_cast %4 : vector<256xf32> to vector<256x1xf32>
    %6 = vector.broadcast %5 : vector<256x1xf32> to vector<256x256xf32>
    %7 = arith.subf %0, %6 : vector<256x256xf32>
    %8 = math.exp %7 : vector<256x256xf32>
    %9 = vector.broadcast %5 : vector<256x1xf32> to vector<256x256xf32>
    %10 = arith.subf %0, %9 : vector<256x256xf32>
    %cst_5 = arith.constant dense<0.000000e+00> : vector<256xf32>
    %11 = vector.multi_reduction <add>, %8, %cst_5 [1] : vector<256x256xf32> to vector<256xf32>
    %12 = vector.shape_cast %11 : vector<256xf32> to vector<256x1xf32>
    %13 = math.log %12 : vector<256x1xf32>
    %14 = vector.broadcast %13 : vector<256x1xf32> to vector<256x256xf32>
    %15 = arith.subf %10, %14 : vector<256x256xf32>
    %cst_6 = arith.constant 9.99999997E-7 : f32
    %16 = vector.broadcast %cst_6 : f32 to vector<256x256xf32>
    %17 = arith.addf %2, %16 : vector<256x256xf32>
    %18 = math.log %17 : vector<256x256xf32>
    %19 = arith.mulf %18, %2 : vector<256x256xf32>
    %20 = arith.mulf %15, %2 : vector<256x256xf32>
    %21 = arith.subf %19, %20 : vector<256x256xf32>
    %cst_7 = arith.constant dense<0.000000e+00> : vector<256xf32>
    %22 = vector.multi_reduction <add>, %21, %cst_7 [1] : vector<256x256xf32> to vector<256xf32>
    %23 = vector.shape_cast %22 : vector<256xf32> to vector<256x1xf32>
    %24 = arith.mulf %23, %3 : vector<256x1xf32>
    %c0_8 = arith.constant 0 : index
    %c0_9 = arith.constant 0 : index
    %25 = vector.load %arg4[%c0_8, %c0_9] : memref<256x1xf32, #tpu.memory_space<vmem>>, vector<256x1xf32>
    tpu.vector_store %arg4[%c0_8, %c0_9], %24 {strides = array<i32>} : memref<256x1xf32, #tpu.memory_space<vmem>>, vector<256x1xf32>,
    return
  }
  func.func @transform_0(%arg0: i32) -> (i32, i32) {
    %c0_i32 = arith.constant 0 : i32
    %c0_i32_0 = arith.constant 0 : i32
    return %arg0, %c0_i32 : i32, i32
  }
  func.func @transform_1(%arg0: i32) -> (i32, i32) {
    %c0_i32 = arith.constant 0 : i32
    %c0_i32_0 = arith.constant 0 : i32
    return %arg0, %c0_i32 : i32, i32
  }
  func.func @transform_2(%arg0: i32) -> (i32, i32) {
    %c0_i32 = arith.constant 0 : i32
    %c0_i32_0 = arith.constant 0 : i32
    return %arg0, %c0_i32 : i32, i32
  }
  func.func @transform_3(%arg0: i32) -> (i32, i32) {
    %c0_i32 = arith.constant 0 : i32
    %c0_i32_0 = arith.constant 0 : i32
    return %arg0, %c0_i32 : i32, i32
  }
}

</mosaic_0001>

<llo_original>
// kernel: tpu_custom_call.1
$region0: #{tpu_custom_call.1}
  #allocation0 [shape = 'u32[]', space=smem, size = 0x4, offset = 0x4, fixed_abs, tag = 'smem constant byte address 0x4 - core index']
  #allocation1 [shape = 'u32[144,128]{1,0:T(1,128)}', space=vmem, size = 0x12000, scoped, tag = 'internal scratch']
  %s0 = inlined_call_operand.hbm [shape: f32[512,256], index: 0, kind: input, shape index: {}]
  %s1 = inlined_call_operand.vmem [shape: bf16[512,256], index: 1, kind: input, shape index: {}]
  %s2 = inlined_call_operand.vmem [shape: f32[512,1], index: 2, kind: input, shape index: {}]
  %s3 = inlined_call_operand.vmem [shape: f32[512,1], index: 3, kind: output, shape index: {}]
  %s4 = sld [smem:[#allocation0]]
  $region49: #{tpu_custom_call.1} parent=0
    _
  %s6 = ssub.s32 1, %s4
  %s7 = scalar_select 0, %s6, %s4
  $region1: #{tpu_custom_call.1} parent=0
    #allocation2 [shape = 'u8[524288]{0}', space=vmem, size = 0x80000, scoped, tag = 'input window, operand 0']
    #allocation3 [shape = 's32[2]{0}', space=sflag, size = 0x8, scoped, tag = 'scoped memory for tpu_custom_call.1']
    %8 = vsyncpa [#allocation3], 0
    %s9 = scalar_lea.sflag [#allocation3], 1
    %10 = vsyncpa %s9, 0
    loop: start=0, step=1, limit=4
    $region2: #{tpu_custom_call.1} parent=1 // loop_pre_header
      _
    $region3: #{tpu_custom_call.1} parent=1 // loop_header
      %s12 = sphi 0, %s16
      %p13 = scmp.ge.s32.totalorder %s12, 4
      %s22 = sphi 0, %s24
      %s25 = sphi 0, %s22
      %s26 = sphi 0, %s25
      %s42 = sphi 0, %s26
      %s48 = sphi 0, %s50
      %s51 = sphi 0, %s48
      %s52 = sphi 0, %s51
      %s68 = sphi 0, %s52
      %s74 = sphi 0, %s76
      %s77 = sphi 0, %s74
      %s78 = sphi 0, %s77
      %s94 = sphi 0, %s78
      %s100 = sphi 0, %s102
      %s103 = sphi 0, %s100
      %s104 = sphi 0, %s103
      %s120 = sphi 0, %s104
    $region4: #{tpu_custom_call.1} parent=1 // loop_header_branch
      %15 = sbr.rel (%p13) target = $region8
    $region5: #{tpu_custom_call.1} parent=1 // loop_body
      %s17 = ssub.s32 %s12, 1
      %s18 = ssub.s32 %s12, 2
      %s19 = sadd.s32 %s12, 1
      %s20 = ssub.s32 %s12, %s19
      %p21 = scmp.eq.s32.totalorder %s20, 0
      %s23 = sadd.s32 %s22, 1
      %s24 = scalar_select %p21, %s22, %s23
      %p27 = pneg %p21
      %p28 = scmp.eq.s32.totalorder %s12, 1
      %p29 = por %p27, %p28
      %p30 = scmp.ne.s32.totalorder %s22, %s25
      %p31 = scmp.eq.s32.totalorder %s12, 0
      %p32 = por %p30, %p31
      %p33 = scmp.ne.s32.totalorder %s22, %s25
      %p34 = scmp.eq.s32.totalorder %s17, 1
      %p35 = por %p33, %p34
      %p36 = scmp.ne.s32.totalorder %s25, %s26
      %p37 = scmp.eq.s32.totalorder %s17, 0
      %p38 = por %p36, %p37
      %p39 = scmp.ne.s32.totalorder %s25, %s26
      %p40 = scmp.eq.s32.totalorder %s18, 1
      %p41 = por %p39, %p40
      %p43 = scmp.ne.s32.totalorder %s26, %s42
      %p44 = scmp.eq.s32.totalorder %s18, 0
      %p45 = por %p43, %p44
      %s46 = ssub.s32 %s12, %s19
      %p47 = scmp.eq.s32.totalorder %s46, 0
      %s49 = sadd.s32 %s48, 1
      %s50 = scalar_select %p47, %s48, %s49
      %p53 = pneg %p47
      %p54 = scmp.eq.s32.totalorder %s12, 1
      %p55 = por %p53, %p54
      %p56 = scmp.ne.s32.totalorder %s48, %s51
      %p57 = scmp.eq.s32.totalorder %s12, 0
      %p58 = por %p56, %p57
      %p59 = scmp.ne.s32.totalorder %s48, %s51
      %p60 = scmp.eq.s32.totalorder %s17, 1
      %p61 = por %p59, %p60
      %p62 = scmp.ne.s32.totalorder %s51, %s52
      %p63 = scmp.eq.s32.totalorder %s17, 0
      %p64 = por %p62, %p63
      %p65 = scmp.ne.s32.totalorder %s51, %s52
      %p66 = scmp.eq.s32.totalorder %s18, 1
      %p67 = por %p65, %p66
      %p69 = scmp.ne.s32.totalorder %s52, %s68
      %p70 = scmp.eq.s32.totalorder %s18, 0
      %p71 = por %p69, %p70
      %s72 = ssub.s32 %s12, %s19
      %p73 = scmp.eq.s32.totalorder %s72, 0
      %s75 = sadd.s32 %s74, 1
      %s76 = scalar_select %p73, %s74, %s75
      %p79 = pneg %p73
      %p80 = scmp.eq.s32.totalorder %s12, 1
      %p81 = por %p79, %p80
      %p82 = scmp.ne.s32.totalorder %s74, %s77
      %p83 = scmp.eq.s32.totalorder %s12, 0
      %p84 = por %p82, %p83
      %p85 = scmp.ne.s32.totalorder %s74, %s77
      %p86 = scmp.eq.s32.totalorder %s17, 1
      %p87 = por %p85, %p86
      %p88 = scmp.ne.s32.totalorder %s77, %s78
      %p89 = scmp.eq.s32.totalorder %s17, 0
      %p90 = por %p88, %p89
      %p91 = scmp.ne.s32.totalorder %s77, %s78
      %p92 = scmp.eq.s32.totalorder %s18, 1
      %p93 = por %p91, %p92
      %p95 = scmp.ne.s32.totalorder %s78, %s94
      %p96 = scmp.eq.s32.totalorder %s18, 0
      %p97 = por %p95, %p96
      %s98 = ssub.s32 %s12, %s19
      %p99 = scmp.eq.s32.totalorder %s98, 0
      %s101 = sadd.s32 %s100, 1
      %s102 = scalar_select %p99, %s100, %s101
      %p105 = pneg %p99
      %p106 = scmp.eq.s32.totalorder %s12, 1
      %p107 = por %p105, %p106
      %p108 = scmp.ne.s32.totalorder %s100, %s103
      %p109 = scmp.eq.s32.totalorder %s12, 0
      %p110 = por %p108, %p109
      %p111 = scmp.ne.s32.totalorder %s100, %s103
      %p112 = scmp.eq.s32.totalorder %s17, 1
      %p113 = por %p111, %p112
      %p114 = scmp.ne.s32.totalorder %s103, %s104
      %p115 = scmp.eq.s32.totalorder %s17, 0
      %p116 = por %p114, %p115
      %p117 = scmp.ne.s32.totalorder %s103, %s104
      %p118 = scmp.eq.s32.totalorder %s18, 1
      %p119 = por %p117, %p118
      %p121 = scmp.ne.s32.totalorder %s104, %s120
      %p122 = scmp.eq.s32.totalorder %s18, 0
      %p123 = por %p121, %p122
      %p124 = scmp.le.s32.totalorder 1, %s12
      %p125 = scmp.lt.s32.totalorder %s12, 3
      %p126 = pnand %p124, %p125
      %p127 = pneg %p126
      // Predicated region
      $region9: #{tpu_custom_call.1} parent=5 // pred_check
        _
      $region10: #{tpu_custom_call.1} parent=5 // pred_check_branch
        %129 = sbr.rel (%p126) target = $region12
      $region11: #{tpu_custom_call.1} parent=5 // pred_region
        %s130 = ssub.s32 %s12, 1
      $region12: #{tpu_custom_call.1} parent=5 // pred_fallthru
        _
      %p131 = scmp.lt.s32.totalorder %s12, 2
      // Predicated region
      $region13: #{tpu_custom_call.1} parent=5 // pred_check
        %p132 = pneg %p131
      $region14: #{tpu_custom_call.1} parent=5 // pred_check_branch
        %134 = sbr.rel (%p132) target = $region16
      $region15: #{tpu_custom_call.1} parent=5 // pred_region
        // Predicated region
        $region17: #{tpu_custom_call.1} parent=15 // pred_check
          %p135 = pneg %p32
        $region18: #{tpu_custom_call.1} parent=15 // pred_check_branch
          %137 = sbr.rel (%p135) target = $region20
        $region19: #{tpu_custom_call.1} parent=15 // pred_region
          %s138 = sand.u32 %s22, 1
          %s139 = scalar_lea.sflag [#allocation3], %s138
          %s140 = sand.u32 %s22, 1
          %s141 = smul.addr %s140, 512
          %s142 = scalar_lea.vmem [#allocation2], %s141
          %s143 = smul.u32 32, %s12
          %s145 = ssub.s32 8192, 8192
          %146 = vsyncadd %s139, %s145
          %s147 = smul.addr %s143, 2
          %s148 = smul.addr %s147, 128
          %s149 = scalar_lea.hbm %s0, %s148
          %s150 = sshll.u32 %s142, 4
          %s151 = int_to_ptr.vmem [resolvable:$true] %s150
          %156 = dma.hbm_to_vmem [thread:$0]  %s149, 8192, %s151, %s139, 256, 256, 16
        $region20: #{tpu_custom_call.1} parent=15 // pred_fallthru
          _
        // Predicated region
        $region21: #{tpu_custom_call.1} parent=15 // pred_check
          %p157 = pneg %p58
        $region22: #{tpu_custom_call.1} parent=15 // pred_check_branch
          %159 = sbr.rel (%p157) target = $region24
        $region23: #{tpu_custom_call.1} parent=15 // pred_region
          %s160 = smul.u32 32, %s12
          %p161 = scmp.lt.s32.totalorder %s160, 63
          %s162 = scalar_select %p161, %s160, 63
          %s163 = smul.addr %s162, 2
          %s164 = smul.addr %s163, 4
          %s165 = scalar_lea.vmem %s1, %s164
          %s166 = smul.u32 32, %s12
        $region24: #{tpu_custom_call.1} parent=15 // pred_fallthru
          _
        // Predicated region
        $region25: #{tpu_custom_call.1} parent=15 // pred_check
          %p167 = pneg %p84
        $region26: #{tpu_custom_call.1} parent=15 // pred_check_branch
          %169 = sbr.rel (%p167) target = $region28
        $region27: #{tpu_custom_call.1} parent=15 // pred_region
          %s170 = smul.u32 32, %s12
          %p171 = scmp.lt.s32.totalorder %s170, 63
          %s172 = scalar_select %p171, %s170, 63
          %s173 = smul.addr %s172, 8
          %s174 = scalar_lea.vmem %s2, %s173
          %s175 = smul.u32 32, %s12
        $region28: #{tpu_custom_call.1} parent=15 // pred_fallthru
          _
      $region16: #{tpu_custom_call.1} parent=5 // pred_fallthru
        _
      %p176 = scmp.le.s32.totalorder 1, %s12
      %p177 = scmp.lt.s32.totalorder %s12, 3
      %p178 = pnand %p176, %p177
      %p179 = pneg %p178
      // Predicated region
      $region29: #{tpu_custom_call.1} parent=5 // pred_check
        _
      $region30: #{tpu_custom_call.1} parent=5 // pred_check_branch
        %181 = sbr.rel (%p178) target = $region32
      $region31: #{tpu_custom_call.1} parent=5 // pred_region
        %s182 = ssub.s32 %s12, 1
        %s183 = sand.u32 %s25, 1
        %s184 = scalar_lea.sflag [#allocation3], %s183
        %s185 = sand.u32 %s25, 1
        %s186 = smul.addr %s185, 512
        %s187 = scalar_lea.vmem [#allocation2], %s186
        // Predicated region
        $region33: #{tpu_custom_call.1} parent=31 // pred_check
          %p188 = pneg %p38
        $region34: #{tpu_custom_call.1} parent=31 // pred_check_branch
          %190 = sbr.rel (%p188) target = $region36
        $region35: #{tpu_custom_call.1} parent=31 // pred_region
          %191 = dma.done %s184, 8192
        $region36: #{tpu_custom_call.1} parent=31 // pred_fallthru
          _
        %s192 = sand.u32 %s25, 1
        %s193 = scalar_lea.sflag [#allocation3], %s192
        %s194 = sand.u32 %s25, 1
        %s195 = smul.addr %s194, 512
        %s196 = scalar_lea.vmem [#allocation2], %s195
        %p197 = pneg %p38
        %p198 = pneg %p35
        %s199 = smul.u32 32, %s17
        %p200 = scmp.lt.s32.totalorder %s199, 63
        %s201 = scalar_select %p200, %s199, 63
        %s202 = smul.addr %s201, 2
        %s203 = smul.addr %s202, 4
        %s204 = scalar_lea.vmem %s1, %s203
        %p205 = pneg %p64
        %p206 = pneg %p61
        %s207 = smul.u32 32, %s17
        %p208 = scmp.lt.s32.totalorder %s207, 63
        %s209 = scalar_select %p208, %s207, 63
        %s210 = smul.addr %s209, 8
        %s211 = scalar_lea.vmem %s2, %s210
        %p212 = pneg %p90
        %p213 = pneg %p87
        %p214 = pneg %p116
        %p215 = pneg %p113
        %s216 = smul.u32 32, %s17
        %p217 = scmp.lt.s32.totalorder %s216, 63
        %s218 = scalar_select %p217, %s216, 63
        %s219 = smul.addr %s218, 8
        %s220 = scalar_lea.vmem %s3, %s219
        %s221 = smul.u32 32, %s17
        %s222 = smul.u32 32, %s17
        %p223 = scmp.lt.s32.totalorder %s222, 63
        %s224 = scalar_select %p223, %s222, 63
        %s225 = smul.addr %s224, 2
        %s226 = smul.addr %s225, 4
        %s227 = scalar_lea.vmem %s1, %s226
        %s228 = smul.u32 32, %s17
        %s229 = smul.u32 32, %s17
        %p230 = scmp.lt.s32.totalorder %s229, 63
        %s231 = scalar_select %p230, %s229, 63
        %s232 = smul.addr %s231, 8
        %s233 = scalar_lea.vmem %s2, %s232
        %s234 = smul.u32 32, %s17
        %s235 = smul.u32 32, %s17
        %p236 = scmp.lt.s32.totalorder %s235, 63
        %s237 = scalar_select %p236, %s235, 63
        %s238 = smul.addr %s237, 8
        %s239 = scalar_lea.vmem %s3, %s238
        %s240 = smul.u32 32, %s17
        %v241 = vld [vmem:[%s187] sm:$0xff]
        %v242 = vld [vmem:[%s187 + $0x8] sm:$0xff]
        %v243 = vld [vmem:[%s187 + $0x10] sm:$0xff]
        %v244 = vld [vmem:[%s187 + $0x18] sm:$0xff]
        %v245 = vld [vmem:[%s187 + $0x20] sm:$0xff]
        %v246 = vld [vmem:[%s187 + $0x28] sm:$0xff]
        %v247 = vld [vmem:[%s187 + $0x30] sm:$0xff]
        %v248 = vld [vmem:[%s187 + $0x38] sm:$0xff]
        %v249 = vld [vmem:[%s187 + $0x40] sm:$0xff]
        %v250 = vld [vmem:[%s187 + $0x48] sm:$0xff]
        %v251 = vld [vmem:[%s187 + $0x50] sm:$0xff]
        %v252 = vld [vmem:[%s187 + $0x58] sm:$0xff]
        %v253 = vld [vmem:[%s187 + $0x60] sm:$0xff]
        %v254 = vld [vmem:[%s187 + $0x68] sm:$0xff]
        %v255 = vld [vmem:[%s187 + $0x70] sm:$0xff]
        %v256 = vld [vmem:[%s187 + $0x78] sm:$0xff]
        %v257 = vld [vmem:[%s187 + $0x80] sm:$0xff]
        %v258 = vld [vmem:[%s187 + $0x88] sm:$0xff]
        %v259 = vld [vmem:[%s187 + $0x90] sm:$0xff]
        %v260 = vld [vmem:[%s187 + $0x98] sm:$0xff]
        %v261 = vld [vmem:[%s187 + $0xa0] sm:$0xff]
        %v262 = vld [vmem:[%s187 + $0xa8] sm:$0xff]
        %v263 = vld [vmem:[%s187 + $0xb0] sm:$0xff]
        %v264 = vld [vmem:[%s187 + $0xb8] sm:$0xff]
        %v265 = vld [vmem:[%s187 + $0xc0] sm:$0xff]
        %v266 = vld [vmem:[%s187 + $0xc8] sm:$0xff]
        %v267 = vld [vmem:[%s187 + $0xd0] sm:$0xff]
        %v268 = vld [vmem:[%s187 + $0xd8] sm:$0xff]
        %v269 = vld [vmem:[%s187 + $0xe0] sm:$0xff]
        %v270 = vld [vmem:[%s187 + $0xe8] sm:$0xff]
        %v271 = vld [vmem:[%s187 + $0xf0] sm:$0xff]
        %v272 = vld [vmem:[%s187 + $0xf8] sm:$0xff]
        %v273 = vld [vmem:[%s187 + $0x100] sm:$0xff]
        %v274 = vld [vmem:[%s187 + $0x108] sm:$0xff]
        %v275 = vld [vmem:[%s187 + $0x110] sm:$0xff]
        %v276 = vld [vmem:[%s187 + $0x118] sm:$0xff]
        %v277 = vld [vmem:[%s187 + $0x120] sm:$0xff]
        %v278 = vld [vmem:[%s187 + $0x128] sm:$0xff]
        %v279 = vld [vmem:[%s187 + $0x130] sm:$0xff]
        %v280 = vld [vmem:[%s187 + $0x138] sm:$0xff]
        %v281 = vld [vmem:[%s187 + $0x140] sm:$0xff]
        %v282 = vld [vmem:[%s187 + $0x148] sm:$0xff]
        %v283 = vld [vmem:[%s187 + $0x150] sm:$0xff]
        %v284 = vld [vmem:[%s187 + $0x158] sm:$0xff]
        %v285 = vld [vmem:[%s187 + $0x160] sm:$0xff]
        %v286 = vld [vmem:[%s187 + $0x168] sm:$0xff]
        %v287 = vld [vmem:[%s187 + $0x170] sm:$0xff]
        %v288 = vld [vmem:[%s187 + $0x178] sm:$0xff]
        %v289 = vld [vmem:[%s187 + $0x180] sm:$0xff]
        %v290 = vld [vmem:[%s187 + $0x188] sm:$0xff]
        %v291 = vld [vmem:[%s187 + $0x190] sm:$0xff]
        %v292 = vld [vmem:[%s187 + $0x198] sm:$0xff]
        %v293 = vld [vmem:[%s187 + $0x1a0] sm:$0xff]
        %v294 = vld [vmem:[%s187 + $0x1a8] sm:$0xff]
        %v295 = vld [vmem:[%s187 + $0x1b0] sm:$0xff]
        %v296 = vld [vmem:[%s187 + $0x1b8] sm:$0xff]
        %v297 = vld [vmem:[%s187 + $0x1c0] sm:$0xff]
        %v298 = vld [vmem:[%s187 + $0x1c8] sm:$0xff]
        %v299 = vld [vmem:[%s187 + $0x1d0] sm:$0xff]
        %v300 = vld [vmem:[%s187 + $0x1d8] sm:$0xff]
        %v301 = vld [vmem:[%s187 + $0x1e0] sm:$0xff]
        %v302 = vld [vmem:[%s187 + $0x1e8] sm:$0xff]
        %v303 = vld [vmem:[%s187 + $0x1f0] sm:$0xff]
        %v304 = vld [vmem:[%s187 + $0x1f8] sm:$0xff]
        %v305 = vld [vmem:[%s227] sm:$0xff]
        %v306 = vld [vmem:[%s227 + $0x8] sm:$0xff]
        %v307 = vld [vmem:[%s227 + $0x10] sm:$0xff]
        %v308 = vld [vmem:[%s227 + $0x18] sm:$0xff]
        %v309 = vld [vmem:[%s227 + $0x20] sm:$0xff]
        %v310 = vld [vmem:[%s227 + $0x28] sm:$0xff]
        %v311 = vld [vmem:[%s227 + $0x30] sm:$0xff]
        %v312 = vld [vmem:[%s227 + $0x38] sm:$0xff]
        %v313 = vld [vmem:[%s227 + $0x40] sm:$0xff]
        %v314 = vld [vmem:[%s227 + $0x48] sm:$0xff]
        %v315 = vld [vmem:[%s227 + $0x50] sm:$0xff]
        %v316 = vld [vmem:[%s227 + $0x58] sm:$0xff]
        %v317 = vld [vmem:[%s227 + $0x60] sm:$0xff]
        %v318 = vld [vmem:[%s227 + $0x68] sm:$0xff]
        %v319 = vld [vmem:[%s227 + $0x70] sm:$0xff]
        %v320 = vld [vmem:[%s227 + $0x78] sm:$0xff]
        %v321 = vld [vmem:[%s227 + $0x80] sm:$0xff]
        %v322 = vld [vmem:[%s227 + $0x88] sm:$0xff]
        %v323 = vld [vmem:[%s227 + $0x90] sm:$0xff]
        %v324 = vld [vmem:[%s227 + $0x98] sm:$0xff]
        %v325 = vld [vmem:[%s227 + $0xa0] sm:$0xff]
        %v326 = vld [vmem:[%s227 + $0xa8] sm:$0xff]
        %v327 = vld [vmem:[%s227 + $0xb0] sm:$0xff]
        %v328 = vld [vmem:[%s227 + $0xb8] sm:$0xff]
        %v329 = vld [vmem:[%s227 + $0xc0] sm:$0xff]
        %v330 = vld [vmem:[%s227 + $0xc8] sm:$0xff]
        %v331 = vld [vmem:[%s227 + $0xd0] sm:$0xff]
        %v332 = vld [vmem:[%s227 + $0xd8] sm:$0xff]
        %v333 = vld [vmem:[%s227 + $0xe0] sm:$0xff]
        %v334 = vld [vmem:[%s227 + $0xe8] sm:$0xff]
        %v335 = vld [vmem:[%s227 + $0xf0] sm:$0xff]
        %v336 = vld [vmem:[%s227 + $0xf8] sm:$0xff]
        %v337 = vunpack.c.l.bf16 %v305
        %v338 = vunpack.c.h.bf16 %v305
        %v339 = vunpack.c.l.bf16 %v306
        %v340 = vunpack.c.h.bf16 %v306
        %v341 = vunpack.c.l.bf16 %v307
        %v342 = vunpack.c.h.bf16 %v307
        %v343 = vunpack.c.l.bf16 %v308
        %v344 = vunpack.c.h.bf16 %v308
        %v345 = vunpack.c.l.bf16 %v309
        %v346 = vunpack.c.h.bf16 %v309
        %v347 = vunpack.c.l.bf16 %v310
        %v348 = vunpack.c.h.bf16 %v310
        %v349 = vunpack.c.l.bf16 %v311
        %v350 = vunpack.c.h.bf16 %v311
        %v351 = vunpack.c.l.bf16 %v312
        %v352 = vunpack.c.h.bf16 %v312
        %v353 = vunpack.c.l.bf16 %v313
        %v354 = vunpack.c.h.bf16 %v313
        %v355 = vunpack.c.l.bf16 %v314
        %v356 = vunpack.c.h.bf16 %v314
        %v357 = vunpack.c.l.bf16 %v315
        %v358 = vunpack.c.h.bf16 %v315
        %v359 = vunpack.c.l.bf16 %v316
        %v360 = vunpack.c.h.bf16 %v316
        %v361 = vunpack.c.l.bf16 %v317
        %v362 = vunpack.c.h.bf16 %v317
        %v363 = vunpack.c.l.bf16 %v318
        %v364 = vunpack.c.h.bf16 %v318
        %v365 = vunpack.c.l.bf16 %v319
        %v366 = vunpack.c.h.bf16 %v319
        %v367 = vunpack.c.l.bf16 %v320
        %v368 = vunpack.c.h.bf16 %v320
        %v369 = vunpack.c.l.bf16 %v321
        %v370 = vunpack.c.h.bf16 %v321
        %v371 = vunpack.c.l.bf16 %v322
        %v372 = vunpack.c.h.bf16 %v322
        %v373 = vunpack.c.l.bf16 %v323
        %v374 = vunpack.c.h.bf16 %v323
        %v375 = vunpack.c.l.bf16 %v324
        %v376 = vunpack.c.h.bf16 %v324
        %v377 = vunpack.c.l.bf16 %v325
        %v378 = vunpack.c.h.bf16 %v325
        %v379 = vunpack.c.l.bf16 %v326
        %v380 = vunpack.c.h.bf16 %v326
        %v381 = vunpack.c.l.bf16 %v327
        %v382 = vunpack.c.h.bf16 %v327
        %v383 = vunpack.c.l.bf16 %v328
        %v384 = vunpack.c.h.bf16 %v328
        %v385 = vunpack.c.l.bf16 %v329
        %v386 = vunpack.c.h.bf16 %v329
        %v387 = vunpack.c.l.bf16 %v330
        %v388 = vunpack.c.h.bf16 %v330
        %v389 = vunpack.c.l.bf16 %v331
        %v390 = vunpack.c.h.bf16 %v331
        %v391 = vunpack.c.l.bf16 %v332
        %v392 = vunpack.c.h.bf16 %v332
        %v393 = vunpack.c.l.bf16 %v333
        %v394 = vunpack.c.h.bf16 %v333
        %v395 = vunpack.c.l.bf16 %v334
        %v396 = vunpack.c.h.bf16 %v334
        %v397 = vunpack.c.l.bf16 %v335
        %v398 = vunpack.c.h.bf16 %v335
        %v399 = vunpack.c.l.bf16 %v336
        %v400 = vunpack.c.h.bf16 %v336
        %v401 = vld [vmem:[%s233] sm:$0xff]
        %v402 = vld [vmem:[%s233 + $0x8] sm:$0xff]
        %v403 = vld [vmem:[%s233 + $0x10] sm:$0xff]
        %v404 = vld [vmem:[%s233 + $0x18] sm:$0xff]
        %v405 = vld [vmem:[%s233 + $0x20] sm:$0xff]
        %v406 = vld [vmem:[%s233 + $0x28] sm:$0xff]
        %v407 = vld [vmem:[%s233 + $0x30] sm:$0xff]
        %v408 = vld [vmem:[%s233 + $0x38] sm:$0xff]
        %v409 = vld [vmem:[%s233 + $0x40] sm:$0xff]
        %v410 = vld [vmem:[%s233 + $0x48] sm:$0xff]
        %v411 = vld [vmem:[%s233 + $0x50] sm:$0xff]
        %v412 = vld [vmem:[%s233 + $0x58] sm:$0xff]
        %v413 = vld [vmem:[%s233 + $0x60] sm:$0xff]
        %v414 = vld [vmem:[%s233 + $0x68] sm:$0xff]
        %v415 = vld [vmem:[%s233 + $0x70] sm:$0xff]
        %v416 = vld [vmem:[%s233 + $0x78] sm:$0xff]
        %v417 = vld [vmem:[%s233 + $0x80] sm:$0xff]
        %v418 = vld [vmem:[%s233 + $0x88] sm:$0xff]
        %v419 = vld [vmem:[%s233 + $0x90] sm:$0xff]
        %v420 = vld [vmem:[%s233 + $0x98] sm:$0xff]
        %v421 = vld [vmem:[%s233 + $0xa0] sm:$0xff]
        %v422 = vld [vmem:[%s233 + $0xa8] sm:$0xff]
        %v423 = vld [vmem:[%s233 + $0xb0] sm:$0xff]
        %v424 = vld [vmem:[%s233 + $0xb8] sm:$0xff]
        %v425 = vld [vmem:[%s233 + $0xc0] sm:$0xff]
        %v426 = vld [vmem:[%s233 + $0xc8] sm:$0xff]
        %v427 = vld [vmem:[%s233 + $0xd0] sm:$0xff]
        %v428 = vld [vmem:[%s233 + $0xd8] sm:$0xff]
        %v429 = vld [vmem:[%s233 + $0xe0] sm:$0xff]
        %v430 = vld [vmem:[%s233 + $0xe8] sm:$0xff]
        %v431 = vld [vmem:[%s233 + $0xf0] sm:$0xff]
        %v432 = vld [vmem:[%s233 + $0xf8] sm:$0xff]
        %v433 = vmax.f32 %v241, %v242
        %434 = vmax.xlane.f32.xlu0 %v433
        %v435 = vpop.xlane.xlu0 %434
        %v436 = vmax.f32 %v243, %v244
        %437 = vmax.xlane.f32.xlu0 %v436
        %v438 = vpop.xlane.xlu0 %437
        %v439 = vmax.f32 %v245, %v246
        %440 = vmax.xlane.f32.xlu0 %v439
        %v441 = vpop.xlane.xlu0 %440
        %v442 = vmax.f32 %v247, %v248
        %443 = vmax.xlane.f32.xlu0 %v442
        %v444 = vpop.xlane.xlu0 %443
        %v445 = vmax.f32 %v249, %v250
        %446 = vmax.xlane.f32.xlu0 %v445
        %v447 = vpop.xlane.xlu0 %446
        %v448 = vmax.f32 %v251, %v252
        %449 = vmax.xlane.f32.xlu0 %v448
        %v450 = vpop.xlane.xlu0 %449
        %v451 = vmax.f32 %v253, %v254
        %452 = vmax.xlane.f32.xlu0 %v451
        %v453 = vpop.xlane.xlu0 %452
        %v454 = vmax.f32 %v255, %v256
        %455 = vmax.xlane.f32.xlu0 %v454
        %v456 = vpop.xlane.xlu0 %455
        %v457 = vmax.f32 %v257, %v258
        %458 = vmax.xlane.f32.xlu0 %v457
        %v459 = vpop.xlane.xlu0 %458
        %v460 = vmax.f32 %v259, %v260
        %461 = vmax.xlane.f32.xlu0 %v460
        %v462 = vpop.xlane.xlu0 %461
        %v463 = vmax.f32 %v261, %v262
        %464 = vmax.xlane.f32.xlu0 %v463
        %v465 = vpop.xlane.xlu0 %464
        %v466 = vmax.f32 %v263, %v264
        %467 = vmax.xlane.f32.xlu0 %v466
        %v468 = vpop.xlane.xlu0 %467
        %v469 = vmax.f32 %v265, %v266
        %470 = vmax.xlane.f32.xlu0 %v469
        %v471 = vpop.xlane.xlu0 %470
        %v472 = vmax.f32 %v267, %v268
        %473 = vmax.xlane.f32.xlu0 %v472
        %v474 = vpop.xlane.xlu0 %473
        %v475 = vmax.f32 %v269, %v270
        %476 = vmax.xlane.f32.xlu0 %v475
        %v477 = vpop.xlane.xlu0 %476
        %v478 = vmax.f32 %v271, %v272
        %479 = vmax.xlane.f32.xlu0 %v478
        %v480 = vpop.xlane.xlu0 %479
        %v481 = vmax.f32 %v273, %v274
        %482 = vmax.xlane.f32.xlu0 %v481
        %v483 = vpop.xlane.xlu0 %482
        %v484 = vmax.f32 %v275, %v276
        %485 = vmax.xlane.f32.xlu0 %v484
        %v486 = vpop.xlane.xlu0 %485
        %v487 = vmax.f32 %v277, %v278
        %488 = vmax.xlane.f32.xlu0 %v487
        %v489 = vpop.xlane.xlu0 %488
        %v490 = vmax.f32 %v279, %v280
        %491 = vmax.xlane.f32.xlu0 %v490
        %v492 = vpop.xlane.xlu0 %491
        %v493 = vmax.f32 %v281, %v282
        %494 = vmax.xlane.f32.xlu0 %v493
        %v495 = vpop.xlane.xlu0 %494
        %v496 = vmax.f32 %v283, %v284
        %497 = vmax.xlane.f32.xlu0 %v496
        %v498 = vpop.xlane.xlu0 %497
        %v499 = vmax.f32 %v285, %v286
        %500 = vmax.xlane.f32.xlu0 %v499
        %v501 = vpop.xlane.xlu0 %500
        %v502 = vmax.f32 %v287, %v288
        %503 = vmax.xlane.f32.xlu0 %v502
        %v504 = vpop.xlane.xlu0 %503
        %v505 = vmax.f32 %v289, %v290
        %506 = vmax.xlane.f32.xlu0 %v505
        %v507 = vpop.xlane.xlu0 %506
        %v508 = vmax.f32 %v291, %v292
        %509 = vmax.xlane.f32.xlu0 %v508
        %v510 = vpop.xlane.xlu0 %509
        %v511 = vmax.f32 %v293, %v294
        %512 = vmax.xlane.f32.xlu0 %v511
        %v513 = vpop.xlane.xlu0 %512
        %v514 = vmax.f32 %v295, %v296
        %515 = vmax.xlane.f32.xlu0 %v514
        %v516 = vpop.xlane.xlu0 %515
        %v517 = vmax.f32 %v297, %v298
        %518 = vmax.xlane.f32.xlu0 %v517
        %v519 = vpop.xlane.xlu0 %518
        %v520 = vmax.f32 %v299, %v300
        %521 = vmax.xlane.f32.xlu0 %v520
        %v522 = vpop.xlane.xlu0 %521
        %v523 = vmax.f32 %v301, %v302
        %524 = vmax.xlane.f32.xlu0 %v523
        %v525 = vpop.xlane.xlu0 %524
        %v526 = vmax.f32 %v303, %v304
        %527 = vmax.xlane.f32.xlu0 %v526
        %v528 = vpop.xlane.xlu0 %527
        %v529 = vsub.f32 %v241, %v435
        %v530 = vsub.f32 %v242, %v435
        %v531 = vsub.f32 %v243, %v438
        %v532 = vsub.f32 %v244, %v438
        %v533 = vsub.f32 %v245, %v441
        %v534 = vsub.f32 %v246, %v441
        %v535 = vsub.f32 %v247, %v444
        %v536 = vsub.f32 %v248, %v444
        %v537 = vsub.f32 %v249, %v447
        %v538 = vsub.f32 %v250, %v447
        %v539 = vsub.f32 %v251, %v450
        %v540 = vsub.f32 %v252, %v450
        %v541 = vsub.f32 %v253, %v453
        %v542 = vsub.f32 %v254, %v453
        %v543 = vsub.f32 %v255, %v456
        %v544 = vsub.f32 %v256, %v456
        %v545 = vsub.f32 %v257, %v459
        %v546 = vsub.f32 %v258, %v459
        %v547 = vsub.f32 %v259, %v462
        %v548 = vsub.f32 %v260, %v462
        %v549 = vsub.f32 %v261, %v465
        %v550 = vsub.f32 %v262, %v465
        %v551 = vsub.f32 %v263, %v468
        %v552 = vsub.f32 %v264, %v468
        %v553 = vsub.f32 %v265, %v471
        %v554 = vsub.f32 %v266, %v471
        %v555 = vsub.f32 %v267, %v474
        %v556 = vsub.f32 %v268, %v474
        %v557 = vsub.f32 %v269, %v477
        %v558 = vsub.f32 %v270, %v477
        %v559 = vsub.f32 %v271, %v480
        %v560 = vsub.f32 %v272, %v480
        %v561 = vsub.f32 %v273, %v483
        %v562 = vsub.f32 %v274, %v483
        %v563 = vsub.f32 %v275, %v486
        %v564 = vsub.f32 %v276, %v486
        %v565 = vsub.f32 %v277, %v489
        %v566 = vsub.f32 %v278, %v489
        %v567 = vsub.f32 %v279, %v492
        %v568 = vsub.f32 %v280, %v492
        %v569 = vsub.f32 %v281, %v495
        %v570 = vsub.f32 %v282, %v495
        %v571 = vsub.f32 %v283, %v498
        %v572 = vsub.f32 %v284, %v498
        %v573 = vsub.f32 %v285, %v501
        %v574 = vsub.f32 %v286, %v501
        %v575 = vsub.f32 %v287, %v504
        %v576 = vsub.f32 %v288, %v504
        %v577 = vsub.f32 %v289, %v507
        %v578 = vsub.f32 %v290, %v507
        %v579 = vsub.f32 %v291, %v510
        %v580 = vsub.f32 %v292, %v510
        %v581 = vsub.f32 %v293, %v513
        %v582 = vsub.f32 %v294, %v513
        %v583 = vsub.f32 %v295, %v516
        %v584 = vsub.f32 %v296, %v516
        %v585 = vsub.f32 %v297, %v519
        %v586 = vsub.f32 %v298, %v519
        %v587 = vsub.f32 %v299, %v522
        %v588 = vsub.f32 %v300, %v522
        %v589 = vsub.f32 %v301, %v525
        %v590 = vsub.f32 %v302, %v525
        %v591 = vsub.f32 %v303, %v528
        %v592 = vsub.f32 %v304, %v528
        %v593 = vmul.f32 %v529, 1.442695
        %v594 = vpow.pop %v593
        %v595 = vmul.f32 %v530, 1.442695
        %v596 = vpow.pop %v595
        %v597 = vmul.f32 %v531, 1.442695
        %v598 = vpow.pop %v597
        %v599 = vmul.f32 %v532, 1.442695
        %v600 = vpow.pop %v599
        %v601 = vmul.f32 %v533, 1.442695
        %v602 = vpow.pop %v601
        %v603 = vmul.f32 %v534, 1.442695
        %v604 = vpow.pop %v603
        %v605 = vmul.f32 %v535, 1.442695
        %v606 = vpow.pop %v605
        %v607 = vmul.f32 %v536, 1.442695
        %v608 = vpow.pop %v607
        %v609 = vmul.f32 %v537, 1.442695
        %v610 = vpow.pop %v609
        %v611 = vmul.f32 %v538, 1.442695
        %v612 = vpow.pop %v611
        %v613 = vmul.f32 %v539, 1.442695
        %v614 = vpow.pop %v613
        %v615 = vmul.f32 %v540, 1.442695
        %v616 = vpow.pop %v615
        %v617 = vmul.f32 %v541, 1.442695
        %v618 = vpow.pop %v617
        %v619 = vmul.f32 %v542, 1.442695
        %v620 = vpow.pop %v619
        %v621 = vmul.f32 %v543, 1.442695
        %v622 = vpow.pop %v621
        %v623 = vmul.f32 %v544, 1.442695
        %v624 = vpow.pop %v623
        %v625 = vmul.f32 %v545, 1.442695
        %v626 = vpow.pop %v625
        %v627 = vmul.f32 %v546, 1.442695
        %v628 = vpow.pop %v627
        %v629 = vmul.f32 %v547, 1.442695
        %v630 = vpow.pop %v629
        %v631 = vmul.f32 %v548, 1.442695
        %v632 = vpow.pop %v631
        %v633 = vmul.f32 %v549, 1.442695
        %v634 = vpow.pop %v633
        %v635 = vmul.f32 %v550, 1.442695
        %v636 = vpow.pop %v635
        %v637 = vmul.f32 %v551, 1.442695
        %v638 = vpow.pop %v637
        %v639 = vmul.f32 %v552, 1.442695
        %v640 = vpow.pop %v639
        %v641 = vmul.f32 %v553, 1.442695
        %v642 = vpow.pop %v641
        %v643 = vmul.f32 %v554, 1.442695
        %v644 = vpow.pop %v643
        %v645 = vmul.f32 %v555, 1.442695
        %v646 = vpow.pop %v645
        %v647 = vmul.f32 %v556, 1.442695
        %v648 = vpow.pop %v647
        %v649 = vmul.f32 %v557, 1.442695
        %v650 = vpow.pop %v649
        %v651 = vmul.f32 %v558, 1.442695
        %v652 = vpow.pop %v651
        %v653 = vmul.f32 %v559, 1.442695
        %v654 = vpow.pop %v653
        %v655 = vmul.f32 %v560, 1.442695
        %v656 = vpow.pop %v655
        %v657 = vmul.f32 %v561, 1.442695
        %v658 = vpow.pop %v657
        %v659 = vmul.f32 %v562, 1.442695
        %v660 = vpow.pop %v659
        %v661 = vmul.f32 %v563, 1.442695
        %v662 = vpow.pop %v661
        %v663 = vmul.f32 %v564, 1.442695
        %v664 = vpow.pop %v663
        %v665 = vmul.f32 %v565, 1.442695
        %v666 = vpow.pop %v665
        %v667 = vmul.f32 %v566, 1.442695
        %v668 = vpow.pop %v667
        %v669 = vmul.f32 %v567, 1.442695
        %v670 = vpow.pop %v669
        %v671 = vmul.f32 %v568, 1.442695
        %v672 = vpow.pop %v671
        %v673 = vmul.f32 %v569, 1.442695
        %v674 = vpow.pop %v673
        %v675 = vmul.f32 %v570, 1.442695
        %v676 = vpow.pop %v675
        %v677 = vmul.f32 %v571, 1.442695
        %v678 = vpow.pop %v677
        %v679 = vmul.f32 %v572, 1.442695
        %v680 = vpow.pop %v679
        %v681 = vmul.f32 %v573, 1.442695
        %v682 = vpow.pop %v681
        %v683 = vmul.f32 %v574, 1.442695
        %v684 = vpow.pop %v683
        %v685 = vmul.f32 %v575, 1.442695
        %v686 = vpow.pop %v685
        %v687 = vmul.f32 %v576, 1.442695
        %v688 = vpow.pop %v687
        %v689 = vmul.f32 %v577, 1.442695
        %v690 = vpow.pop %v689
        %v691 = vmul.f32 %v578, 1.442695
        %v692 = vpow.pop %v691
        %v693 = vmul.f32 %v579, 1.442695
        %v694 = vpow.pop %v693
        %v695 = vmul.f32 %v580, 1.442695
        %v696 = vpow.pop %v695
        %v697 = vmul.f32 %v581, 1.442695
        %v698 = vpow.pop %v697
        %v699 = vmul.f32 %v582, 1.442695
        %v700 = vpow.pop %v699
        %v701 = vmul.f32 %v583, 1.442695
        %v702 = vpow.pop %v701
        %v703 = vmul.f32 %v584, 1.442695
        %v704 = vpow.pop %v703
        %v705 = vmul.f32 %v585, 1.442695
        %v706 = vpow.pop %v705
        %v707 = vmul.f32 %v586, 1.442695
        %v708 = vpow.pop %v707
        %v709 = vmul.f32 %v587, 1.442695
        %v710 = vpow.pop %v709
        %v711 = vmul.f32 %v588, 1.442695
        %v712 = vpow.pop %v711
        %v713 = vmul.f32 %v589, 1.442695
        %v714 = vpow.pop %v713
        %v715 = vmul.f32 %v590, 1.442695
        %v716 = vpow.pop %v715
        %v717 = vmul.f32 %v591, 1.442695
        %v718 = vpow.pop %v717
        %v719 = vmul.f32 %v592, 1.442695
        %v720 = vpow.pop %v719
        %v721 = vadd.f32 %v594, %v596
        %722 = vadd.xlane.f32.xlu0 %v721
        %v723 = vpop.xlane.xlu0 %722
        %v724 = vadd.f32 %v598, %v600
        %725 = vadd.xlane.f32.xlu0 %v724
        %v726 = vpop.xlane.xlu0 %725
        %v727 = vadd.f32 %v602, %v604
        %728 = vadd.xlane.f32.xlu0 %v727
        %v729 = vpop.xlane.xlu0 %728
        %v730 = vadd.f32 %v606, %v608
        %731 = vadd.xlane.f32.xlu0 %v730
        %v732 = vpop.xlane.xlu0 %731
        %v733 = vadd.f32 %v610, %v612
        %734 = vadd.xlane.f32.xlu0 %v733
        %v735 = vpop.xlane.xlu0 %734
        %v736 = vadd.f32 %v614, %v616
        %737 = vadd.xlane.f32.xlu0 %v736
        %v738 = vpop.xlane.xlu0 %737
        %v739 = vadd.f32 %v618, %v620
        %740 = vadd.xlane.f32.xlu0 %v739
        %v741 = vpop.xlane.xlu0 %740
        %v742 = vadd.f32 %v622, %v624
        %743 = vadd.xlane.f32.xlu0 %v742
        %v744 = vpop.xlane.xlu0 %743
        %v745 = vadd.f32 %v626, %v628
        %746 = vadd.xlane.f32.xlu0 %v745
        %v747 = vpop.xlane.xlu0 %746
        %v748 = vadd.f32 %v630, %v632
        %749 = vadd.xlane.f32.xlu0 %v748
        %v750 = vpop.xlane.xlu0 %749
        %v751 = vadd.f32 %v634, %v636
        %752 = vadd.xlane.f32.xlu0 %v751
        %v753 = vpop.xlane.xlu0 %752
        %v754 = vadd.f32 %v638, %v640
        %755 = vadd.xlane.f32.xlu0 %v754
        %v756 = vpop.xlane.xlu0 %755
        %v757 = vadd.f32 %v642, %v644
        %758 = vadd.xlane.f32.xlu0 %v757
        %v759 = vpop.xlane.xlu0 %758
        %v760 = vadd.f32 %v646, %v648
        %761 = vadd.xlane.f32.xlu0 %v760
        %v762 = vpop.xlane.xlu0 %761
        %v763 = vadd.f32 %v650, %v652
        %764 = vadd.xlane.f32.xlu0 %v763
        %v765 = vpop.xlane.xlu0 %764
        %v766 = vadd.f32 %v654, %v656
        %767 = vadd.xlane.f32.xlu0 %v766
        %v768 = vpop.xlane.xlu0 %767
        %v769 = vadd.f32 %v658, %v660
        %770 = vadd.xlane.f32.xlu0 %v769
        %v771 = vpop.xlane.xlu0 %770
        %v772 = vadd.f32 %v662, %v664
        %773 = vadd.xlane.f32.xlu0 %v772
        %v774 = vpop.xlane.xlu0 %773
        %v775 = vadd.f32 %v666, %v668
        %776 = vadd.xlane.f32.xlu0 %v775
        %v777 = vpop.xlane.xlu0 %776
        %v778 = vadd.f32 %v670, %v672
        %779 = vadd.xlane.f32.xlu0 %v778
        %v780 = vpop.xlane.xlu0 %779
        %v781 = vadd.f32 %v674, %v676
        %782 = vadd.xlane.f32.xlu0 %v781
        %v783 = vpop.xlane.xlu0 %782
        %v784 = vadd.f32 %v678, %v680
        %785 = vadd.xlane.f32.xlu0 %v784
        %v786 = vpop.xlane.xlu0 %785
        %v787 = vadd.f32 %v682, %v684
        %788 = vadd.xlane.f32.xlu0 %v787
        %v789 = vpop.xlane.xlu0 %788
        %v790 = vadd.f32 %v686, %v688
        %791 = vadd.xlane.f32.xlu0 %v790
        %v792 = vpop.xlane.xlu0 %791
        %v793 = vadd.f32 %v690, %v692
        %794 = vadd.xlane.f32.xlu0 %v793
        %v795 = vpop.xlane.xlu0 %794
        %v796 = vadd.f32 %v694, %v696
        %797 = vadd.xlane.f32.xlu0 %v796
        %v798 = vpop.xlane.xlu0 %797
        %v799 = vadd.f32 %v698, %v700
        %800 = vadd.xlane.f32.xlu0 %v799
        %v801 = vpop.xlane.xlu0 %800
        %v802 = vadd.f32 %v702, %v704
        %803 = vadd.xlane.f32.xlu0 %v802
        %v804 = vpop.xlane.xlu0 %803
        %v805 = vadd.f32 %v706, %v708
        %806 = vadd.xlane.f32.xlu0 %v805
        %v807 = vpop.xlane.xlu0 %806
        %v808 = vadd.f32 %v710, %v712
        %809 = vadd.xlane.f32.xlu0 %v808
        %v810 = vpop.xlane.xlu0 %809
        %v811 = vadd.f32 %v714, %v716
        %812 = vadd.xlane.f32.xlu0 %v811
        %v813 = vpop.xlane.xlu0 %812
        %v814 = vadd.f32 %v718, %v720
        %815 = vadd.xlane.f32.xlu0 %v814
        %v816 = vpop.xlane.xlu0 %815
        %v817 = vlog2.pop %v723
        %v818 = vmul.f32 %v817, 0.6931472
        %v819 = vlog2.pop %v726
        %v820 = vmul.f32 %v819, 0.6931472
        %v821 = vlog2.pop %v729
        %v822 = vmul.f32 %v821, 0.6931472
        %v823 = vlog2.pop %v732
        %v824 = vmul.f32 %v823, 0.6931472
        %v825 = vlog2.pop %v735
        %v826 = vmul.f32 %v825, 0.6931472
        %v827 = vlog2.pop %v738
        %v828 = vmul.f32 %v827, 0.6931472
        %v829 = vlog2.pop %v741
        %v830 = vmul.f32 %v829, 0.6931472
        %v831 = vlog2.pop %v744
        %v832 = vmul.f32 %v831, 0.6931472
        %v833 = vlog2.pop %v747
        %v834 = vmul.f32 %v833, 0.6931472
        %v835 = vlog2.pop %v750
        %v836 = vmul.f32 %v835, 0.6931472
        %v837 = vlog2.pop %v753
        %v838 = vmul.f32 %v837, 0.6931472
        %v839 = vlog2.pop %v756
        %v840 = vmul.f32 %v839, 0.6931472
        %v841 = vlog2.pop %v759
        %v842 = vmul.f32 %v841, 0.6931472
        %v843 = vlog2.pop %v762
        %v844 = vmul.f32 %v843, 0.6931472
        %v845 = vlog2.pop %v765
        %v846 = vmul.f32 %v845, 0.6931472
        %v847 = vlog2.pop %v768
        %v848 = vmul.f32 %v847, 0.6931472
        %v849 = vlog2.pop %v771
        %v850 = vmul.f32 %v849, 0.6931472
        %v851 = vlog2.pop %v774
        %v852 = vmul.f32 %v851, 0.6931472
        %v853 = vlog2.pop %v777
        %v854 = vmul.f32 %v853, 0.6931472
        %v855 = vlog2.pop %v780
        %v856 = vmul.f32 %v855, 0.6931472
        %v857 = vlog2.pop %v783
        %v858 = vmul.f32 %v857, 0.6931472
        %v859 = vlog2.pop %v786
        %v860 = vmul.f32 %v859, 0.6931472
        %v861 = vlog2.pop %v789
        %v862 = vmul.f32 %v861, 0.6931472
        %v863 = vlog2.pop %v792
        %v864 = vmul.f32 %v863, 0.6931472
        %v865 = vlog2.pop %v795
        %v866 = vmul.f32 %v865, 0.6931472
        %v867 = vlog2.pop %v798
        %v868 = vmul.f32 %v867, 0.6931472
        %v869 = vlog2.pop %v801
        %v870 = vmul.f32 %v869, 0.6931472
        %v871 = vlog2.pop %v804
        %v872 = vmul.f32 %v871, 0.6931472
        %v873 = vlog2.pop %v807
        %v874 = vmul.f32 %v873, 0.6931472
        %v875 = vlog2.pop %v810
        %v876 = vmul.f32 %v875, 0.6931472
        %v877 = vlog2.pop %v813
        %v878 = vmul.f32 %v877, 0.6931472
        %v879 = vlog2.pop %v816
        %v880 = vmul.f32 %v879, 0.6931472
        %v881 = vsub.f32 %v529, %v818
        %v882 = vsub.f32 %v530, %v818
        %v883 = vsub.f32 %v531, %v820
        %v884 = vsub.f32 %v532, %v820
        %v885 = vsub.f32 %v533, %v822
        %v886 = vsub.f32 %v534, %v822
        %v887 = vsub.f32 %v535, %v824
        %v888 = vsub.f32 %v536, %v824
        %v889 = vsub.f32 %v537, %v826
        %v890 = vsub.f32 %v538, %v826
        %v891 = vsub.f32 %v539, %v828
        %v892 = vsub.f32 %v540, %v828
        %v893 = vsub.f32 %v541, %v830
        %v894 = vsub.f32 %v542, %v830
        %v895 = vsub.f32 %v543, %v832
        %v896 = vsub.f32 %v544, %v832
        %v897 = vsub.f32 %v545, %v834
        %v898 = vsub.f32 %v546, %v834
        %v899 = vsub.f32 %v547, %v836
        %v900 = vsub.f32 %v548, %v836
        %v901 = vsub.f32 %v549, %v838
        %v902 = vsub.f32 %v550, %v838
        %v903 = vsub.f32 %v551, %v840
        %v904 = vsub.f32 %v552, %v840
        %v905 = vsub.f32 %v553, %v842
        %v906 = vsub.f32 %v554, %v842
        %v907 = vsub.f32 %v555, %v844
        %v908 = vsub.f32 %v556, %v844
        %v909 = vsub.f32 %v557, %v846
        %v910 = vsub.f32 %v558, %v846
        %v911 = vsub.f32 %v559, %v848
        %v912 = vsub.f32 %v560, %v848
        %v913 = vsub.f32 %v561, %v850
        %v914 = vsub.f32 %v562, %v850
        %v915 = vsub.f32 %v563, %v852
        %v916 = vsub.f32 %v564, %v852
        %v917 = vsub.f32 %v565, %v854
        %v918 = vsub.f32 %v566, %v854
        %v919 = vsub.f32 %v567, %v856
        %v920 = vsub.f32 %v568, %v856
        %v921 = vsub.f32 %v569, %v858
        %v922 = vsub.f32 %v570, %v858
        %v923 = vsub.f32 %v571, %v860
        %v924 = vsub.f32 %v572, %v860
        %v925 = vsub.f32 %v573, %v862
        %v926 = vsub.f32 %v574, %v862
        %v927 = vsub.f32 %v575, %v864
        %v928 = vsub.f32 %v576, %v864
        %v929 = vsub.f32 %v577, %v866
        %v930 = vsub.f32 %v578, %v866
        %v931 = vsub.f32 %v579, %v868
        %v932 = vsub.f32 %v580, %v868
        %v933 = vsub.f32 %v581, %v870
        %v934 = vsub.f32 %v582, %v870
        %v935 = vsub.f32 %v583, %v872
        %v936 = vsub.f32 %v584, %v872
        %v937 = vsub.f32 %v585, %v874
        %v938 = vsub.f32 %v586, %v874
        %v939 = vsub.f32 %v587, %v876
        %v940 = vsub.f32 %v588, %v876
        %v941 = vsub.f32 %v589, %v878
        %v942 = vsub.f32 %v590, %v878
        %v943 = vsub.f32 %v591, %v880
        %v944 = vsub.f32 %v592, %v880
        %v945 = vadd.f32 %v337, 1e-06
        %v946 = vadd.f32 %v338, 1e-06
        %v947 = vadd.f32 %v339, 1e-06
        %v948 = vadd.f32 %v340, 1e-06
        %v949 = vadd.f32 %v341, 1e-06
        %v950 = vadd.f32 %v342, 1e-06
        %v951 = vadd.f32 %v343, 1e-06
        %v952 = vadd.f32 %v344, 1e-06
        %v953 = vadd.f32 %v345, 1e-06
        %v954 = vadd.f32 %v346, 1e-06
        %v955 = vadd.f32 %v347, 1e-06
        %v956 = vadd.f32 %v348, 1e-06
        %v957 = vadd.f32 %v349, 1e-06
        %v958 = vadd.f32 %v350, 1e-06
        %v959 = vadd.f32 %v351, 1e-06
        %v960 = vadd.f32 %v352, 1e-06
        %v961 = vadd.f32 %v353, 1e-06
        %v962 = vadd.f32 %v354, 1e-06
        %v963 = vadd.f32 %v355, 1e-06
        %v964 = vadd.f32 %v356, 1e-06
        %v965 = vadd.f32 %v357, 1e-06
        %v966 = vadd.f32 %v358, 1e-06
        %v967 = vadd.f32 %v359, 1e-06
        %v968 = vadd.f32 %v360, 1e-06
        %v969 = vadd.f32 %v361, 1e-06
        %v970 = vadd.f32 %v362, 1e-06
        %v971 = vadd.f32 %v363, 1e-06
        %v972 = vadd.f32 %v364, 1e-06
        %v973 = vadd.f32 %v365, 1e-06
        %v974 = vadd.f32 %v366, 1e-06
        %v975 = vadd.f32 %v367, 1e-06
        %v976 = vadd.f32 %v368, 1e-06
        %v977 = vadd.f32 %v369, 1e-06
        %v978 = vadd.f32 %v370, 1e-06
        %v979 = vadd.f32 %v371, 1e-06
        %v980 = vadd.f32 %v372, 1e-06
        %v981 = vadd.f32 %v373, 1e-06
        %v982 = vadd.f32 %v374, 1e-06
        %v983 = vadd.f32 %v375, 1e-06
        %v984 = vadd.f32 %v376, 1e-06
        %v985 = vadd.f32 %v377, 1e-06
        %v986 = vadd.f32 %v378, 1e-06
        %v987 = vadd.f32 %v379, 1e-06
        %v988 = vadd.f32 %v380, 1e-06
        %v989 = vadd.f32 %v381, 1e-06
        %v990 = vadd.f32 %v382, 1e-06
        %v991 = vadd.f32 %v383, 1e-06
        %v992 = vadd.f32 %v384, 1e-06
        %v993 = vadd.f32 %v385, 1e-06
        %v994 = vadd.f32 %v386, 1e-06
        %v995 = vadd.f32 %v387, 1e-06
        %v996 = vadd.f32 %v388, 1e-06
        %v997 = vadd.f32 %v389, 1e-06
        %v998 = vadd.f32 %v390, 1e-06
        %v999 = vadd.f32 %v391, 1e-06
        %v1000 = vadd.f32 %v392, 1e-06
        %v1001 = vadd.f32 %v393, 1e-06
        %v1002 = vadd.f32 %v394, 1e-06
        %v1003 = vadd.f32 %v395, 1e-06
        %v1004 = vadd.f32 %v396, 1e-06
        %v1005 = vadd.f32 %v397, 1e-06
        %v1006 = vadd.f32 %v398, 1e-06
        %v1007 = vadd.f32 %v399, 1e-06
        %v1008 = vadd.f32 %v400, 1e-06
        %v1009 = vlog2.pop %v945
        %v1010 = vmul.f32 %v1009, 0.6931472
        %v1011 = vlog2.pop %v946
        %v1012 = vmul.f32 %v1011, 0.6931472
        %v1013 = vlog2.pop %v947
        %v1014 = vmul.f32 %v1013, 0.6931472
        %v1015 = vlog2.pop %v948
        %v1016 = vmul.f32 %v1015, 0.6931472
        %v1017 = vlog2.pop %v949
        %v1018 = vmul.f32 %v1017, 0.6931472
        %v1019 = vlog2.pop %v950
        %v1020 = vmul.f32 %v1019, 0.6931472
        %v1021 = vlog2.pop %v951
        %v1022 = vmul.f32 %v1021, 0.6931472
        %v1023 = vlog2.pop %v952
        %v1024 = vmul.f32 %v1023, 0.6931472
        %v1025 = vlog2.pop %v953
        %v1026 = vmul.f32 %v1025, 0.6931472
        %v1027 = vlog2.pop %v954
        %v1028 = vmul.f32 %v1027, 0.6931472
        %v1029 = vlog2.pop %v955
        %v1030 = vmul.f32 %v1029, 0.6931472
        %v1031 = vlog2.pop %v956
        %v1032 = vmul.f32 %v1031, 0.6931472
        %v1033 = vlog2.pop %v957
        %v1034 = vmul.f32 %v1033, 0.6931472
        %v1035 = vlog2.pop %v958
        %v1036 = vmul.f32 %v1035, 0.6931472
        %v1037 = vlog2.pop %v959
        %v1038 = vmul.f32 %v1037, 0.6931472
        %v1039 = vlog2.pop %v960
        %v1040 = vmul.f32 %v1039, 0.6931472
        %v1041 = vlog2.pop %v961
        %v1042 = vmul.f32 %v1041, 0.6931472
        %v1043 = vlog2.pop %v962
        %v1044 = vmul.f32 %v1043, 0.6931472
        %v1045 = vlog2.pop %v963
        %v1046 = vmul.f32 %v1045, 0.6931472
        %v1047 = vlog2.pop %v964
        %v1048 = vmul.f32 %v1047, 0.6931472
        %v1049 = vlog2.pop %v965
        %v1050 = vmul.f32 %v1049, 0.6931472
        %v1051 = vlog2.pop %v966
        %v1052 = vmul.f32 %v1051, 0.6931472
        %v1053 = vlog2.pop %v967
        %v1054 = vmul.f32 %v1053, 0.6931472
        %v1055 = vlog2.pop %v968
        %v1056 = vmul.f32 %v1055, 0.6931472
        %v1057 = vlog2.pop %v969
        %v1058 = vmul.f32 %v1057, 0.6931472
        %v1059 = vlog2.pop %v970
        %v1060 = vmul.f32 %v1059, 0.6931472
        %v1061 = vlog2.pop %v971
        %v1062 = vmul.f32 %v1061, 0.6931472
        %v1063 = vlog2.pop %v972
        %v1064 = vmul.f32 %v1063, 0.6931472
        %v1065 = vlog2.pop %v973
        %v1066 = vmul.f32 %v1065, 0.6931472
        %v1067 = vlog2.pop %v974
        %v1068 = vmul.f32 %v1067, 0.6931472
        %v1069 = vlog2.pop %v975
        %v1070 = vmul.f32 %v1069, 0.6931472
        %v1071 = vlog2.pop %v976
        %v1072 = vmul.f32 %v1071, 0.6931472
        %v1073 = vlog2.pop %v977
        %v1074 = vmul.f32 %v1073, 0.6931472
        %v1075 = vlog2.pop %v978
        %v1076 = vmul.f32 %v1075, 0.6931472
        %v1077 = vlog2.pop %v979
        %v1078 = vmul.f32 %v1077, 0.6931472
        %v1079 = vlog2.pop %v980
        %v1080 = vmul.f32 %v1079, 0.6931472
        %v1081 = vlog2.pop %v981
        %v1082 = vmul.f32 %v1081, 0.6931472
        %v1083 = vlog2.pop %v982
        %v1084 = vmul.f32 %v1083, 0.6931472
        %v1085 = vlog2.pop %v983
        %v1086 = vmul.f32 %v1085, 0.6931472
        %v1087 = vlog2.pop %v984
        %v1088 = vmul.f32 %v1087, 0.6931472
        %v1089 = vlog2.pop %v985
        %v1090 = vmul.f32 %v1089, 0.6931472
        %v1091 = vlog2.pop %v986
        %v1092 = vmul.f32 %v1091, 0.6931472
        %v1093 = vlog2.pop %v987
        %v1094 = vmul.f32 %v1093, 0.6931472
        %v1095 = vlog2.pop %v988
        %v1096 = vmul.f32 %v1095, 0.6931472
        %v1097 = vlog2.pop %v989
        %v1098 = vmul.f32 %v1097, 0.6931472
        %v1099 = vlog2.pop %v990
        %v1100 = vmul.f32 %v1099, 0.6931472
        %v1101 = vlog2.pop %v991
        %v1102 = vmul.f32 %v1101, 0.6931472
        %v1103 = vlog2.pop %v992
        %v1104 = vmul.f32 %v1103, 0.6931472
        %v1105 = vlog2.pop %v993
        %v1106 = vmul.f32 %v1105, 0.6931472
        %v1107 = vlog2.pop %v994
        %v1108 = vmul.f32 %v1107, 0.6931472
        %v1109 = vlog2.pop %v995
        %v1110 = vmul.f32 %v1109, 0.6931472
        %v1111 = vlog2.pop %v996
        %v1112 = vmul.f32 %v1111, 0.6931472
        %v1113 = vlog2.pop %v997
        %v1114 = vmul.f32 %v1113, 0.6931472
        %v1115 = vlog2.pop %v998
        %v1116 = vmul.f32 %v1115, 0.6931472
        %v1117 = vlog2.pop %v999
        %v1118 = vmul.f32 %v1117, 0.6931472
        %v1119 = vlog2.pop %v1000
        %v1120 = vmul.f32 %v1119, 0.6931472
        %v1121 = vlog2.pop %v1001
        %v1122 = vmul.f32 %v1121, 0.6931472
        %v1123 = vlog2.pop %v1002
        %v1124 = vmul.f32 %v1123, 0.6931472
        %v1125 = vlog2.pop %v1003
        %v1126 = vmul.f32 %v1125, 0.6931472
        %v1127 = vlog2.pop %v1004
        %v1128 = vmul.f32 %v1127, 0.6931472
        %v1129 = vlog2.pop %v1005
        %v1130 = vmul.f32 %v1129, 0.6931472
        %v1131 = vlog2.pop %v1006
        %v1132 = vmul.f32 %v1131, 0.6931472
        %v1133 = vlog2.pop %v1007
        %v1134 = vmul.f32 %v1133, 0.6931472
        %v1135 = vlog2.pop %v1008
        %v1136 = vmul.f32 %v1135, 0.6931472
        %v1137 = vmul.f32 %v1010, %v337
        %v1138 = vmul.f32 %v1012, %v338
        %v1139 = vmul.f32 %v1014, %v339
        %v1140 = vmul.f32 %v1016, %v340
        %v1141 = vmul.f32 %v1018, %v341
        %v1142 = vmul.f32 %v1020, %v342
        %v1143 = vmul.f32 %v1022, %v343
        %v1144 = vmul.f32 %v1024, %v344
        %v1145 = vmul.f32 %v1026, %v345
        %v1146 = vmul.f32 %v1028, %v346
        %v1147 = vmul.f32 %v1030, %v347
        %v1148 = vmul.f32 %v1032, %v348
        %v1149 = vmul.f32 %v1034, %v349
        %v1150 = vmul.f32 %v1036, %v350
        %v1151 = vmul.f32 %v1038, %v351
        %v1152 = vmul.f32 %v1040, %v352
        %v1153 = vmul.f32 %v1042, %v353
        %v1154 = vmul.f32 %v1044, %v354
        %v1155 = vmul.f32 %v1046, %v355
        %v1156 = vmul.f32 %v1048, %v356
        %v1157 = vmul.f32 %v1050, %v357
        %v1158 = vmul.f32 %v1052, %v358
        %v1159 = vmul.f32 %v1054, %v359
        %v1160 = vmul.f32 %v1056, %v360
        %v1161 = vmul.f32 %v1058, %v361
        %v1162 = vmul.f32 %v1060, %v362
        %v1163 = vmul.f32 %v1062, %v363
        %v1164 = vmul.f32 %v1064, %v364
        %v1165 = vmul.f32 %v1066, %v365
        %v1166 = vmul.f32 %v1068, %v366
        %v1167 = vmul.f32 %v1070, %v367
        %v1168 = vmul.f32 %v1072, %v368
        %v1169 = vmul.f32 %v1074, %v369
        %v1170 = vmul.f32 %v1076, %v370
        %v1171 = vmul.f32 %v1078, %v371
        %v1172 = vmul.f32 %v1080, %v372
        %v1173 = vmul.f32 %v1082, %v373
        %v1174 = vmul.f32 %v1084, %v374
        %v1175 = vmul.f32 %v1086, %v375
        %v1176 = vmul.f32 %v1088, %v376
        %v1177 = vmul.f32 %v1090, %v377
        %v1178 = vmul.f32 %v1092, %v378
        %v1179 = vmul.f32 %v1094, %v379
        %v1180 = vmul.f32 %v1096, %v380
        %v1181 = vmul.f32 %v1098, %v381
        %v1182 = vmul.f32 %v1100, %v382
        %v1183 = vmul.f32 %v1102, %v383
        %v1184 = vmul.f32 %v1104, %v384
        %v1185 = vmul.f32 %v1106, %v385
        %v1186 = vmul.f32 %v1108, %v386
        %v1187 = vmul.f32 %v1110, %v387
        %v1188 = vmul.f32 %v1112, %v388
        %v1189 = vmul.f32 %v1114, %v389
        %v1190 = vmul.f32 %v1116, %v390
        %v1191 = vmul.f32 %v1118, %v391
        %v1192 = vmul.f32 %v1120, %v392
        %v1193 = vmul.f32 %v1122, %v393
        %v1194 = vmul.f32 %v1124, %v394
        %v1195 = vmul.f32 %v1126, %v395
        %v1196 = vmul.f32 %v1128, %v396
        %v1197 = vmul.f32 %v1130, %v397
        %v1198 = vmul.f32 %v1132, %v398
        %v1199 = vmul.f32 %v1134, %v399
        %v1200 = vmul.f32 %v1136, %v400
        %v1201 = vmul.f32 %v881, %v337
        %v1202 = vmul.f32 %v882, %v338
        %v1203 = vmul.f32 %v883, %v339
        %v1204 = vmul.f32 %v884, %v340
        %v1205 = vmul.f32 %v885, %v341
        %v1206 = vmul.f32 %v886, %v342
        %v1207 = vmul.f32 %v887, %v343
        %v1208 = vmul.f32 %v888, %v344
        %v1209 = vmul.f32 %v889, %v345
        %v1210 = vmul.f32 %v890, %v346
        %v1211 = vmul.f32 %v891, %v347
        %v1212 = vmul.f32 %v892, %v348
        %v1213 = vmul.f32 %v893, %v349
        %v1214 = vmul.f32 %v894, %v350
        %v1215 = vmul.f32 %v895, %v351
        %v1216 = vmul.f32 %v896, %v352
        %v1217 = vmul.f32 %v897, %v353
        %v1218 = vmul.f32 %v898, %v354
        %v1219 = vmul.f32 %v899, %v355
        %v1220 = vmul.f32 %v900, %v356
        %v1221 = vmul.f32 %v901, %v357
        %v1222 = vmul.f32 %v902, %v358
        %v1223 = vmul.f32 %v903, %v359
        %v1224 = vmul.f32 %v904, %v360
        %v1225 = vmul.f32 %v905, %v361
        %v1226 = vmul.f32 %v906, %v362
        %v1227 = vmul.f32 %v907, %v363
        %v1228 = vmul.f32 %v908, %v364
        %v1229 = vmul.f32 %v909, %v365
        %v1230 = vmul.f32 %v910, %v366
        %v1231 = vmul.f32 %v911, %v367
        %v1232 = vmul.f32 %v912, %v368
        %v1233 = vmul.f32 %v913, %v369
        %v1234 = vmul.f32 %v914, %v370
        %v1235 = vmul.f32 %v915, %v371
        %v1236 = vmul.f32 %v916, %v372
        %v1237 = vmul.f32 %v917, %v373
        %v1238 = vmul.f32 %v918, %v374
        %v1239 = vmul.f32 %v919, %v375
        %v1240 = vmul.f32 %v920, %v376
        %v1241 = vmul.f32 %v921, %v377
        %v1242 = vmul.f32 %v922, %v378
        %v1243 = vmul.f32 %v923, %v379
        %v1244 = vmul.f32 %v924, %v380
        %v1245 = vmul.f32 %v925, %v381
        %v1246 = vmul.f32 %v926, %v382
        %v1247 = vmul.f32 %v927, %v383
        %v1248 = vmul.f32 %v928, %v384
        %v1249 = vmul.f32 %v929, %v385
        %v1250 = vmul.f32 %v930, %v386
        %v1251 = vmul.f32 %v931, %v387
        %v1252 = vmul.f32 %v932, %v388
        %v1253 = vmul.f32 %v933, %v389
        %v1254 = vmul.f32 %v934, %v390
        %v1255 = vmul.f32 %v935, %v391
        %v1256 = vmul.f32 %v936, %v392
        %v1257 = vmul.f32 %v937, %v393
        %v1258 = vmul.f32 %v938, %v394
        %v1259 = vmul.f32 %v939, %v395
        %v1260 = vmul.f32 %v940, %v396
        %v1261 = vmul.f32 %v941, %v397
        %v1262 = vmul.f32 %v942, %v398
        %v1263 = vmul.f32 %v943, %v399
        %v1264 = vmul.f32 %v944, %v400
        %v1265 = vsub.f32 %v1137, %v1201
        %v1266 = vsub.f32 %v1138, %v1202
        %v1267 = vsub.f32 %v1139, %v1203
        %v1268 = vsub.f32 %v1140, %v1204
        %v1269 = vsub.f32 %v1141, %v1205
        %v1270 = vsub.f32 %v1142, %v1206
        %v1271 = vsub.f32 %v1143, %v1207
        %v1272 = vsub.f32 %v1144, %v1208
        %v1273 = vsub.f32 %v1145, %v1209
        %v1274 = vsub.f32 %v1146, %v1210
        %v1275 = vsub.f32 %v1147, %v1211
        %v1276 = vsub.f32 %v1148, %v1212
        %v1277 = vsub.f32 %v1149, %v1213
        %v1278 = vsub.f32 %v1150, %v1214
        %v1279 = vsub.f32 %v1151, %v1215
        %v1280 = vsub.f32 %v1152, %v1216
        %v1281 = vsub.f32 %v1153, %v1217
        %v1282 = vsub.f32 %v1154, %v1218
        %v1283 = vsub.f32 %v1155, %v1219
        %v1284 = vsub.f32 %v1156, %v1220
        %v1285 = vsub.f32 %v1157, %v1221
        %v1286 = vsub.f32 %v1158, %v1222
        %v1287 = vsub.f32 %v1159, %v1223
        %v1288 = vsub.f32 %v1160, %v1224
        %v1289 = vsub.f32 %v1161, %v1225
        %v1290 = vsub.f32 %v1162, %v1226
        %v1291 = vsub.f32 %v1163, %v1227
        %v1292 = vsub.f32 %v1164, %v1228
        %v1293 = vsub.f32 %v1165, %v1229
        %v1294 = vsub.f32 %v1166, %v1230
        %v1295 = vsub.f32 %v1167, %v1231
        %v1296 = vsub.f32 %v1168, %v1232
        %v1297 = vsub.f32 %v1169, %v1233
        %v1298 = vsub.f32 %v1170, %v1234
        %v1299 = vsub.f32 %v1171, %v1235
        %v1300 = vsub.f32 %v1172, %v1236
        %v1301 = vsub.f32 %v1173, %v1237
        %v1302 = vsub.f32 %v1174, %v1238
        %v1303 = vsub.f32 %v1175, %v1239
        %v1304 = vsub.f32 %v1176, %v1240
        %v1305 = vsub.f32 %v1177, %v1241
        %v1306 = vsub.f32 %v1178, %v1242
        %v1307 = vsub.f32 %v1179, %v1243
        %v1308 = vsub.f32 %v1180, %v1244
        %v1309 = vsub.f32 %v1181, %v1245
        %v1310 = vsub.f32 %v1182, %v1246
        %v1311 = vsub.f32 %v1183, %v1247
        %v1312 = vsub.f32 %v1184, %v1248
        %v1313 = vsub.f32 %v1185, %v1249
        %v1314 = vsub.f32 %v1186, %v1250
        %v1315 = vsub.f32 %v1187, %v1251
        %v1316 = vsub.f32 %v1188, %v1252
        %v1317 = vsub.f32 %v1189, %v1253
        %v1318 = vsub.f32 %v1190, %v1254
        %v1319 = vsub.f32 %v1191, %v1255
        %v1320 = vsub.f32 %v1192, %v1256
        %v1321 = vsub.f32 %v1193, %v1257
        %v1322 = vsub.f32 %v1194, %v1258
        %v1323 = vsub.f32 %v1195, %v1259
        %v1324 = vsub.f32 %v1196, %v1260
        %v1325 = vsub.f32 %v1197, %v1261
        %v1326 = vsub.f32 %v1198, %v1262
        %v1327 = vsub.f32 %v1199, %v1263
        %v1328 = vsub.f32 %v1200, %v1264
        %v1329 = vadd.f32 %v1265, %v1266
        %1330 = vadd.xlane.f32.xlu0 %v1329
        %v1331 = vpop.xlane.xlu0 %1330
        %v1332 = vadd.f32 %v1267, %v1268
        %1333 = vadd.xlane.f32.xlu0 %v1332
        %v1334 = vpop.xlane.xlu0 %1333
        %v1335 = vadd.f32 %v1269, %v1270
        %1336 = vadd.xlane.f32.xlu0 %v1335
        %v1337 = vpop.xlane.xlu0 %1336
        %v1338 = vadd.f32 %v1271, %v1272
        %1339 = vadd.xlane.f32.xlu0 %v1338
        %v1340 = vpop.xlane.xlu0 %1339
        %v1341 = vadd.f32 %v1273, %v1274
        %1342 = vadd.xlane.f32.xlu0 %v1341
        %v1343 = vpop.xlane.xlu0 %1342
        %v1344 = vadd.f32 %v1275, %v1276
        %1345 = vadd.xlane.f32.xlu0 %v1344
        %v1346 = vpop.xlane.xlu0 %1345
        %v1347 = vadd.f32 %v1277, %v1278
        %1348 = vadd.xlane.f32.xlu0 %v1347
        %v1349 = vpop.xlane.xlu0 %1348
        %v1350 = vadd.f32 %v1279, %v1280
        %1351 = vadd.xlane.f32.xlu0 %v1350
        %v1352 = vpop.xlane.xlu0 %1351
        %v1353 = vadd.f32 %v1281, %v1282
        %1354 = vadd.xlane.f32.xlu0 %v1353
        %v1355 = vpop.xlane.xlu0 %1354
        %v1356 = vadd.f32 %v1283, %v1284
        %1357 = vadd.xlane.f32.xlu0 %v1356
        %v1358 = vpop.xlane.xlu0 %1357
        %v1359 = vadd.f32 %v1285, %v1286
        %1360 = vadd.xlane.f32.xlu0 %v1359
        %v1361 = vpop.xlane.xlu0 %1360
        %v1362 = vadd.f32 %v1287, %v1288
        %1363 = vadd.xlane.f32.xlu0 %v1362
        %v1364 = vpop.xlane.xlu0 %1363
        %v1365 = vadd.f32 %v1289, %v1290
        %1366 = vadd.xlane.f32.xlu0 %v1365
        %v1367 = vpop.xlane.xlu0 %1366
        %v1368 = vadd.f32 %v1291, %v1292
        %1369 = vadd.xlane.f32.xlu0 %v1368
        %v1370 = vpop.xlane.xlu0 %1369
        %v1371 = vadd.f32 %v1293, %v1294
        %1372 = vadd.xlane.f32.xlu0 %v1371
        %v1373 = vpop.xlane.xlu0 %1372
        %v1374 = vadd.f32 %v1295, %v1296
        %1375 = vadd.xlane.f32.xlu0 %v1374
        %v1376 = vpop.xlane.xlu0 %1375
        %v1377 = vadd.f32 %v1297, %v1298
        %1378 = vadd.xlane.f32.xlu0 %v1377
        %v1379 = vpop.xlane.xlu0 %1378
        %v1380 = vadd.f32 %v1299, %v1300
        %1381 = vadd.xlane.f32.xlu0 %v1380
        %v1382 = vpop.xlane.xlu0 %1381
        %v1383 = vadd.f32 %v1301, %v1302
        %1384 = vadd.xlane.f32.xlu0 %v1383
        %v1385 = vpop.xlane.xlu0 %1384
        %v1386 = vadd.f32 %v1303, %v1304
        %1387 = vadd.xlane.f32.xlu0 %v1386
        %v1388 = vpop.xlane.xlu0 %1387
        %v1389 = vadd.f32 %v1305, %v1306
        %1390 = vadd.xlane.f32.xlu0 %v1389
        %v1391 = vpop.xlane.xlu0 %1390
        %v1392 = vadd.f32 %v1307, %v1308
        %1393 = vadd.xlane.f32.xlu0 %v1392
        %v1394 = vpop.xlane.xlu0 %1393
        %v1395 = vadd.f32 %v1309, %v1310
        %1396 = vadd.xlane.f32.xlu0 %v1395
        %v1397 = vpop.xlane.xlu0 %1396
        %v1398 = vadd.f32 %v1311, %v1312
        %1399 = vadd.xlane.f32.xlu0 %v1398
        %v1400 = vpop.xlane.xlu0 %1399
        %v1401 = vadd.f32 %v1313, %v1314
        %1402 = vadd.xlane.f32.xlu0 %v1401
        %v1403 = vpop.xlane.xlu0 %1402
        %v1404 = vadd.f32 %v1315, %v1316
        %1405 = vadd.xlane.f32.xlu0 %v1404
        %v1406 = vpop.xlane.xlu0 %1405
        %v1407 = vadd.f32 %v1317, %v1318
        %1408 = vadd.xlane.f32.xlu0 %v1407
        %v1409 = vpop.xlane.xlu0 %1408
        %v1410 = vadd.f32 %v1319, %v1320
        %1411 = vadd.xlane.f32.xlu0 %v1410
        %v1412 = vpop.xlane.xlu0 %1411
        %v1413 = vadd.f32 %v1321, %v1322
        %1414 = vadd.xlane.f32.xlu0 %v1413
        %v1415 = vpop.xlane.xlu0 %1414
        %v1416 = vadd.f32 %v1323, %v1324
        %1417 = vadd.xlane.f32.xlu0 %v1416
        %v1418 = vpop.xlane.xlu0 %1417
        %v1419 = vadd.f32 %v1325, %v1326
        %1420 = vadd.xlane.f32.xlu0 %v1419
        %v1421 = vpop.xlane.xlu0 %1420
        %v1422 = vadd.f32 %v1327, %v1328
        %1423 = vadd.xlane.f32.xlu0 %v1422
        %v1424 = vpop.xlane.xlu0 %1423
        %v1425 = vmul.f32 %v1331, %v401
        %v1426 = vmul.f32 %v1334, %v402
        %v1427 = vmul.f32 %v1337, %v403
        %v1428 = vmul.f32 %v1340, %v404
        %v1429 = vmul.f32 %v1343, %v405
        %v1430 = vmul.f32 %v1346, %v406
        %v1431 = vmul.f32 %v1349, %v407
        %v1432 = vmul.f32 %v1352, %v408
        %v1433 = vmul.f32 %v1355, %v409
        %v1434 = vmul.f32 %v1358, %v410
        %v1435 = vmul.f32 %v1361, %v411
        %v1436 = vmul.f32 %v1364, %v412
        %v1437 = vmul.f32 %v1367, %v413
        %v1438 = vmul.f32 %v1370, %v414
        %v1439 = vmul.f32 %v1373, %v415
        %v1440 = vmul.f32 %v1376, %v416
        %v1441 = vmul.f32 %v1379, %v417
        %v1442 = vmul.f32 %v1382, %v418
        %v1443 = vmul.f32 %v1385, %v419
        %v1444 = vmul.f32 %v1388, %v420
        %v1445 = vmul.f32 %v1391, %v421
        %v1446 = vmul.f32 %v1394, %v422
        %v1447 = vmul.f32 %v1397, %v423
        %v1448 = vmul.f32 %v1400, %v424
        %v1449 = vmul.f32 %v1403, %v425
        %v1450 = vmul.f32 %v1406, %v426
        %v1451 = vmul.f32 %v1409, %v427
        %v1452 = vmul.f32 %v1412, %v428
        %v1453 = vmul.f32 %v1415, %v429
        %v1454 = vmul.f32 %v1418, %v430
        %v1455 = vmul.f32 %v1421, %v431
        %v1456 = vmul.f32 %v1424, %v432
        %vm1457 = vcmask 7168
        %1458 = vst.msk [vmem:[%s239] sm:$0xff] %vm1457, %v1425
        %1459 = vst.msk [vmem:[%s239 + $0x8] sm:$0xff] %vm1457, %v1426
        %1460 = vst.msk [vmem:[%s239 + $0x10] sm:$0xff] %vm1457, %v1427
        %1461 = vst.msk [vmem:[%s239 + $0x18] sm:$0xff] %vm1457, %v1428
        %1462 = vst.msk [vmem:[%s239 + $0x20] sm:$0xff] %vm1457, %v1429
        %1463 = vst.msk [vmem:[%s239 + $0x28] sm:$0xff] %vm1457, %v1430
        %1464 = vst.msk [vmem:[%s239 + $0x30] sm:$0xff] %vm1457, %v1431
        %1465 = vst.msk [vmem:[%s239 + $0x38] sm:$0xff] %vm1457, %v1432
        %1466 = vst.msk [vmem:[%s239 + $0x40] sm:$0xff] %vm1457, %v1433
        %1467 = vst.msk [vmem:[%s239 + $0x48] sm:$0xff] %vm1457, %v1434
        %1468 = vst.msk [vmem:[%s239 + $0x50] sm:$0xff] %vm1457, %v1435
        %1469 = vst.msk [vmem:[%s239 + $0x58] sm:$0xff] %vm1457, %v1436
        %1470 = vst.msk [vmem:[%s239 + $0x60] sm:$0xff] %vm1457, %v1437
        %1471 = vst.msk [vmem:[%s239 + $0x68] sm:$0xff] %vm1457, %v1438
        %1472 = vst.msk [vmem:[%s239 + $0x70] sm:$0xff] %vm1457, %v1439
        %1473 = vst.msk [vmem:[%s239 + $0x78] sm:$0xff] %vm1457, %v1440
        %1474 = vst.msk [vmem:[%s239 + $0x80] sm:$0xff] %vm1457, %v1441
        %1475 = vst.msk [vmem:[%s239 + $0x88] sm:$0xff] %vm1457, %v1442
        %1476 = vst.msk [vmem:[%s239 + $0x90] sm:$0xff] %vm1457, %v1443
        %1477 = vst.msk [vmem:[%s239 + $0x98] sm:$0xff] %vm1457, %v1444
        %1478 = vst.msk [vmem:[%s239 + $0xa0] sm:$0xff] %vm1457, %v1445
        %1479 = vst.msk [vmem:[%s239 + $0xa8] sm:$0xff] %vm1457, %v1446
        %1480 = vst.msk [vmem:[%s239 + $0xb0] sm:$0xff] %vm1457, %v1447
        %1481 = vst.msk [vmem:[%s239 + $0xb8] sm:$0xff] %vm1457, %v1448
        %1482 = vst.msk [vmem:[%s239 + $0xc0] sm:$0xff] %vm1457, %v1449
        %1483 = vst.msk [vmem:[%s239 + $0xc8] sm:$0xff] %vm1457, %v1450
        %1484 = vst.msk [vmem:[%s239 + $0xd0] sm:$0xff] %vm1457, %v1451
        %1485 = vst.msk [vmem:[%s239 + $0xd8] sm:$0xff] %vm1457, %v1452
        %1486 = vst.msk [vmem:[%s239 + $0xe0] sm:$0xff] %vm1457, %v1453
        %1487 = vst.msk [vmem:[%s239 + $0xe8] sm:$0xff] %vm1457, %v1454
        %1488 = vst.msk [vmem:[%s239 + $0xf0] sm:$0xff] %vm1457, %v1455
        %1489 = vst.msk [vmem:[%s239 + $0xf8] sm:$0xff] %vm1457, %v1456
        %s1490 = smul.u32 32, %s17
        %p1491 = scmp.lt.s32.totalorder %s1490, 63
        %s1492 = scalar_select %p1491, %s1490, 63
        %s1493 = smul.addr %s1492, 8
        %s1494 = scalar_lea.vmem %s3, %s1493
        // Predicated region
        $region37: #{tpu_custom_call.1} parent=31 // pred_check
          %p1495 = pneg %p113
        $region38: #{tpu_custom_call.1} parent=31 // pred_check_branch
          %1497 = sbr.rel (%p1495) target = $region40
        $region39: #{tpu_custom_call.1} parent=31 // pred_region
          %s1498 = smul.u32 32, %s17
        $region40: #{tpu_custom_call.1} parent=31 // pred_fallthru
          _
      $region32: #{tpu_custom_call.1} parent=5 // pred_fallthru
        _
      %p1499 = scmp.le.s32.totalorder 2, %s12
      // Predicated region
      $region41: #{tpu_custom_call.1} parent=5 // pred_check
        %p1500 = pneg %p1499
      $region42: #{tpu_custom_call.1} parent=5 // pred_check_branch
        %1502 = sbr.rel (%p1500) target = $region44
      $region43: #{tpu_custom_call.1} parent=5 // pred_region
        %s1503 = ssub.s32 %s12, 2
        // Predicated region
        $region45: #{tpu_custom_call.1} parent=43 // pred_check
          %p1504 = pneg %p119
        $region46: #{tpu_custom_call.1} parent=43 // pred_check_branch
          %1506 = sbr.rel (%p1504) target = $region48
        $region47: #{tpu_custom_call.1} parent=43 // pred_region
          %s1507 = smul.u32 32, %s18
          %p1508 = scmp.lt.s32.totalorder %s1507, 63
          %s1509 = scalar_select %p1508, %s1507, 63
          %s1510 = smul.addr %s1509, 8
          %s1511 = scalar_lea.vmem %s3, %s1510
        $region48: #{tpu_custom_call.1} parent=43 // pred_fallthru
          _
      $region44: #{tpu_custom_call.1} parent=5 // pred_fallthru
        _
    $region6: #{tpu_custom_call.1} parent=1 // loop_footer
      %s16 = sadd.s32 1, %s12
    $region7: #{tpu_custom_call.1} parent=1 // loop_footer_branch
      %11 = sbr.rel target = $region3
    $region8: #{tpu_custom_call.1} parent=1 // loop_exit
      _
    %1512 = vsyncpa [#allocation3], 1
    %s1513 = scalar_lea.sflag [#allocation3], 1
    %1514 = vsyncpa %s1513, 1

</llo_original>
